<compile_context>
chip_gen: v7x
topology: tpu7x:2x2x1
jax: 0.10.0
libtpu: 0.0.40
codegen_flags: <defaults>
</compile_context>

<pallas_src>
import functools

import jax
import jax.numpy as jnp
from jax.experimental import pallas as pl
from jax.experimental.pallas import tpu as pltpu

LOG2 = float(jnp.log(2.0))


def _softplus(z):
    # numerically stable softplus
    return jnp.maximum(z, 0.0) + jnp.log1p(jnp.exp(-jnp.abs(z)))


def _ssp(z):
    # shifted softplus: softplus(z) - log(2)
    return _softplus(z) - LOG2


def update_x_kernel(x_ref, adj_ref,
                    w1a_ref, b1a_ref, w2a_ref, b2a_ref,
                    w1b_ref, b1b_ref, w2b_ref, b2b_ref,
                    o_ref, *, matmul_dtype):
    G, N, F = x_ref.shape                       # static block shape
    adj = adj_ref[...].astype(matmul_dtype)     # (G, N, N) MXU operand

    def gcl(h, w1t, b1, w2t, b2_folded):
        # graph aggregation, per graph: (G,N,N) @ (G,N,F) -> (G,N,F), f32 accum
        agg = jnp.einsum('gij,gjf->gif', adj, h.astype(matmul_dtype),
                         preferred_element_type=jnp.float32)
        # dense layers on the flattened (G*N, F) slab: row/lane-dense matmuls
        flat = agg.reshape(G * N, F)
        z1 = jnp.dot(flat.astype(matmul_dtype), w1t,
                     preferred_element_type=jnp.float32) + b1
        a1 = _softplus(z1)                      # its -log(2) is folded into b2_folded
        z2 = jnp.dot(a1.astype(matmul_dtype), w2t,
                     preferred_element_type=jnp.float32) + b2_folded
        a2 = _ssp(z2)
        return h + a2.reshape(G, N, F)          # residual in f32

    x = x_ref[...]                              # (G, N, F) f32
    x = gcl(x, w1a_ref[...], b1a_ref[...], w2a_ref[...], b2a_ref[...])
    # TODO(synk): PyTorch source calls `self.act()` with no argument (a bug);
    # interpreted as applying ShiftedSoftplus to x between conv1 and conv2.
    x = _ssp(x)
    x = gcl(x, w1b_ref[...], b1b_ref[...], w2b_ref[...], b2b_ref[...])
    o_ref[...] = x.astype(o_ref.dtype)


@functools.partial(jax.jit, static_argnames=("graphs_per_block", "matmul_dtype"))
def update_x_pallas(x, adj, params, *, graphs_per_block=8, matmul_dtype=jnp.float32):
    """x: (B, N, F) node features per graph; adj: (B, N, N) per-graph adjacency."""
    (w1a, b1a, w2a, b2a, w1b, b1b, w2b, b2b) = params
    B, N, F = x.shape
    G = min(graphs_per_block, B)
    assert B % G == 0, "batch must be divisible by graphs_per_block"

    def prep(w1, b1, w2, b2):
        # pre-transpose weights to (in, out); fold first SSP's -log(2) into b2
        w1t = w1.T.astype(matmul_dtype)
        w2t_f32 = w2.T
        b2_folded = b2 - LOG2 * w2t_f32.sum(axis=0, keepdims=True)
        return w1t, b1, w2t_f32.astype(matmul_dtype), b2_folded

    w1a_t, b1a_, w2a_t, b2a_f = prep(w1a, b1a, w2a, b2a)
    w1b_t, b1b_, w2b_t, b2b_f = prep(w1b, b1b, w2b, b2b)

    grid = (B // G,)
    resident = lambda b: (0, 0)                       # weights stay VMEM-resident
    batched = lambda: pl.BlockSpec((G, N, F), lambda b: (b, 0, 0))
    adj_spec = pl.BlockSpec((G, N, N), lambda b: (b, 0, 0))

    cost = pl.CostEstimate(
        flops=int(B * (4 * N * N * F + 8 * N * F * F)),
        transcendentals=int(B * 10 * N * F),
        bytes_accessed=int(4 * (2 * B * N * F + B * N * N) + 4 * (4 * F * F + 4 * F)),
    )

    kernel = functools.partial(update_x_kernel, matmul_dtype=matmul_dtype)

    return pl.pallas_call(
        kernel,
        out_shape=jax.ShapeDtypeStruct((B, N, F), jnp.float32),
        grid_spec=pltpu.PrefetchScalarGridSpec(
            num_scalar_prefetch=0,
            grid=grid,
            in_specs=[
                batched(),                         # x block
                adj_spec,                          # adj block
                pl.BlockSpec((F, F), resident),    # W1a^T
                pl.BlockSpec((1, F), resident),    # b1a
                pl.BlockSpec((F, F), resident),    # W2a^T
                pl.BlockSpec((1, F), resident),    # b2a (shift-folded)
                pl.BlockSpec((F, F), resident),    # W1b^T
                pl.BlockSpec((1, F), resident),    # b1b
                pl.BlockSpec((F, F), resident),    # W2b^T
                pl.BlockSpec((1, F), resident),    # b2b (shift-folded)
            ],
            out_specs=batched(),
        ),
        compiler_params=pltpu.CompilerParams(
            dimension_semantics=("parallel",),
        ),
        cost_estimate=cost,
    )(x, adj, w1a_t, b1a_, w2a_t, b2a_f, w1b_t, b1b_, w2b_t, b2b_f)


# ---------------- pure-JAX reference (original, unfused formulation) ----------------
def _update_x_ref_single(x, adj, params):
    (w1a, b1a, w2a, b2a, w1b, b1b, w2b, b2b) = params

    def gcl(h, w1, b1, w2, b2):
        out = adj @ h
        out = _ssp(out @ w1.T + b1)
        out = _ssp(out @ w2.T + b2)
        return h + out

    x = gcl(x, w1a, b1a, w2a, b2a)
    x = _ssp(x)
    x = gcl(x, w1b, b1b, w2b, b2b)
    return x


def update_x_ref(x, adj, params):
    return jax.vmap(lambda xx, aa: _update_x_ref_single(xx, aa, params))(x, adj)


def init_params(key, in_features, out_features):
    # deterministic synthetic init (nn.Linear-like scale); weights are (out, in)
    ks = jax.random.split(key, 8)

    def lin(kw, kb, fin, fout):
        bound = 1.0 / jnp.sqrt(fin)
        w = jax.random.uniform(kw, (fout, fin), jnp.float32, -bound, bound)
        b = jax.random.uniform(kb, (1, fout), jnp.float32, -bound, bound)
        return w, b

    w1a, b1a = lin(ks[0], ks[1], in_features, out_features)
    w2a, b2a = lin(ks[2], ks[3], out_features, out_features)
    w1b, b1b = lin(ks[4], ks[5], out_features, out_features)
    w2b, b2b = lin(ks[6], ks[7], out_features, out_features)
    return (w1a, b1a, w2a, b2a, w1b, b1b, w2b, b2b)


if __name__ == "__main__":
    key = jax.random.PRNGKey(0)
    k_x, k_adj, k_p = jax.random.split(key, 3)

    B = 16           # batch of graphs (grid "parallel" axis)
    N = 8            # nodes per graph
    F = 32           # in_features == out_features (residual requires equality)

    x = jax.random.normal(k_x, (B, N, F), jnp.float32)
    adj = jax.random.uniform(k_adj, (B, N, N), jnp.float32)
    params = init_params(k_p, F, F)

    ref = update_x_ref(x, adj, params)

    # f32 MXU operands — tight check against the original formulation
    out = update_x_pallas(x, adj, params, graphs_per_block=8,
                          matmul_dtype=jnp.float32)
    out = jax.block_until_ready(out)
    assert jnp.allclose(out, ref, atol=1e-4, rtol=1e-4), "f32 kernel mismatch"

    # bf16 MXU operands (f32 accumulation + f32 VPU/EUP math) — loose check
    out_bf16 = update_x_pallas(x, adj, params, graphs_per_block=8,
                               matmul_dtype=jnp.bfloat16)
    out_bf16 = jax.block_until_ready(out_bf16)
    assert jnp.allclose(out_bf16, ref, atol=2e-1, rtol=2e-1), "bf16 kernel mismatch"

    print("KERNEL_OK")
</pallas_src>

<mosaic_0001>
module attributes {stable_mosaic.version = 11 : i64} {
  func.func @update_x_kernel(%arg0: i32, %arg1: memref<8x8x32xf32, #tpu.memory_space<vmem>>, %arg2: memref<8x8x8xf32, #tpu.memory_space<vmem>>, %arg3: memref<32x32xf32, #tpu.memory_space<vmem>>, %arg4: memref<1x32xf32, #tpu.memory_space<vmem>>, %arg5: memref<32x32xf32, #tpu.memory_space<vmem>>, %arg6: memref<1x32xf32, #tpu.memory_space<vmem>>, %arg7: memref<32x32xf32, #tpu.memory_space<vmem>>, %arg8: memref<1x32xf32, #tpu.memory_space<vmem>>, %arg9: memref<32x32xf32, #tpu.memory_space<vmem>>, %arg10: memref<1x32xf32, #tpu.memory_space<vmem>>, %arg11: memref<8x8x32xf32, #tpu.memory_space<vmem>>) attributes {dimension_semantics = [#tpu.dimension_semantics<parallel>], iteration_bounds = array<i64: 2>, scalar_prefetch = 0 : i64, scratch_operands = 0 : i64, tpu.core_type = #tpu.core_type<tc>, window_params = [{transform_indices = @transform_0, window_bounds = array<i64: 8, 8, 32>}, {transform_indices = @transform_1, window_bounds = array<i64: 8, 8, 8>}, {pipeline_mode = #tpu.pipeline_mode<synchronous>, transform_indices = @transform_2, window_bounds = array<i64: 32, 32>}, {pipeline_mode = #tpu.pipeline_mode<synchronous>, transform_indices = @transform_3, window_bounds = array<i64: 1, 32>}, {pipeline_mode = #tpu.pipeline_mode<synchronous>, transform_indices = @transform_4, window_bounds = array<i64: 32, 32>}, {pipeline_mode = #tpu.pipeline_mode<synchronous>, transform_indices = @transform_5, window_bounds = array<i64: 1, 32>}, {pipeline_mode = #tpu.pipeline_mode<synchronous>, transform_indices = @transform_6, window_bounds = array<i64: 32, 32>}, {pipeline_mode = #tpu.pipeline_mode<synchronous>, transform_indices = @transform_7, window_bounds = array<i64: 1, 32>}, {pipeline_mode = #tpu.pipeline_mode<synchronous>, transform_indices = @transform_8, window_bounds = array<i64: 32, 32>}, {pipeline_mode = #tpu.pipeline_mode<synchronous>, transform_indices = @transform_9, window_bounds = array<i64: 1, 32>}, {transform_indices = @transform_10, window_bounds = array<i64: 8, 8, 32>}]} {
    %c0 = arith.constant 0 : index
    %c0_0 = arith.constant 0 : index
    %c0_1 = arith.constant 0 : index
    %0 = vector.load %arg2[%c0, %c0_0, %c0_1] : memref<8x8x8xf32, #tpu.memory_space<vmem>>, vector<8x8x8xf32>
    %c0_2 = arith.constant 0 : index
    %c0_3 = arith.constant 0 : index
    %c0_4 = arith.constant 0 : index
    %1 = vector.load %arg1[%c0_2, %c0_3, %c0_4] : memref<8x8x32xf32, #tpu.memory_space<vmem>>, vector<8x8x32xf32>
    %c0_5 = arith.constant 0 : index
    %c0_6 = arith.constant 0 : index
    %2 = vector.load %arg3[%c0_5, %c0_6] : memref<32x32xf32, #tpu.memory_space<vmem>>, vector<32x32xf32>
    %c0_7 = arith.constant 0 : index
    %c0_8 = arith.constant 0 : index
    %3 = vector.load %arg4[%c0_7, %c0_8] : memref<1x32xf32, #tpu.memory_space<vmem>>, vector<1x32xf32>
    %c0_9 = arith.constant 0 : index
    %c0_10 = arith.constant 0 : index
    %4 = vector.load %arg5[%c0_9, %c0_10] : memref<32x32xf32, #tpu.memory_space<vmem>>, vector<32x32xf32>
    %c0_11 = arith.constant 0 : index
    %c0_12 = arith.constant 0 : index
    %5 = vector.load %arg6[%c0_11, %c0_12] : memref<1x32xf32, #tpu.memory_space<vmem>>, vector<1x32xf32>
    "tpu.trace_start"() <{level = 10 : i32, message = "gij,gjf->gif"}> : () -> ()
    %cst = arith.constant dense<0.000000e+00> : vector<8x8x32xf32>
    %6 = tpu.matmul %0, %1, %cst {dimension_numbers = #tpu.dot_dimension_numbers<[2], [1], [1], [2], [0, 0, 0, 1, 1, 2], [0], [0]>} : vector<8x8x8xf32>, vector<8x8x32xf32>, vector<8x8x32xf32> -> vector<8x8x32xf32>
    "tpu.trace_stop"() : () -> ()
    %7 = vector.shape_cast %6 : vector<8x8x32xf32> to vector<64x32xf32>
    %cst_13 = arith.constant dense<0.000000e+00> : vector<64x32xf32>
    %8 = tpu.matmul %7, %2, %cst_13 {dimension_numbers = #tpu.dot_dimension_numbers<[1], [0], [0], [1], [0, 0, 1, 1], [], []>} : vector<64x32xf32>, vector<32x32xf32>, vector<64x32xf32> -> vector<64x32xf32>
    %9 = vector.broadcast %3 : vector<1x32xf32> to vector<64x32xf32>
    %10 = arith.addf %8, %9 : vector<64x32xf32>
    %cst_14 = arith.constant 0.000000e+00 : f32
    %11 = vector.broadcast %cst_14 : f32 to vector<64x32xf32>
    %12 = arith.maximumf %10, %11 : vector<64x32xf32>
    %13 = math.absf %10 : vector<64x32xf32>
    %cst_15 = arith.constant 0.000000e+00 : f32
    %14 = vector.broadcast %cst_15 : f32 to vector<64x32xf32>
    %15 = arith.subf %14, %13 : vector<64x32xf32>
    %16 = math.exp %15 : vector<64x32xf32>
    %17 = math.log1p %16 : vector<64x32xf32>
    %18 = arith.addf %12, %17 : vector<64x32xf32>
    %cst_16 = arith.constant dense<0.000000e+00> : vector<64x32xf32>
    %19 = tpu.matmul %18, %4, %cst_16 {dimension_numbers = #tpu.dot_dimension_numbers<[1], [0], [0], [1], [0, 0, 1, 1], [], []>} : vector<64x32xf32>, vector<32x32xf32>, vector<64x32xf32> -> vector<64x32xf32>
    %20 = vector.broadcast %5 : vector<1x32xf32> to vector<64x32xf32>
    %21 = arith.addf %19, %20 : vector<64x32xf32>
    %cst_17 = arith.constant 0.000000e+00 : f32
    %22 = vector.broadcast %cst_17 : f32 to vector<64x32xf32>
    %23 = arith.maximumf %21, %22 : vector<64x32xf32>
    %24 = math.absf %21 : vector<64x32xf32>
    %cst_18 = arith.constant 0.000000e+00 : f32
    %25 = vector.broadcast %cst_18 : f32 to vector<64x32xf32>
    %26 = arith.subf %25, %24 : vector<64x32xf32>
    %27 = math.exp %26 : vector<64x32xf32>
    %28 = math.log1p %27 : vector<64x32xf32>
    %29 = arith.addf %23, %28 : vector<64x32xf32>
    %cst_19 = arith.constant 0.693147182 : f32
    %30 = vector.broadcast %cst_19 : f32 to vector<64x32xf32>
    %31 = arith.subf %29, %30 : vector<64x32xf32>
    %32 = vector.shape_cast %31 : vector<64x32xf32> to vector<8x8x32xf32>
    %33 = arith.addf %1, %32 : vector<8x8x32xf32>
    %cst_20 = arith.constant 0.000000e+00 : f32
    %34 = vector.broadcast %cst_20 : f32 to vector<8x8x32xf32>
    %35 = arith.maximumf %33, %34 : vector<8x8x32xf32>
    %36 = math.absf %33 : vector<8x8x32xf32>
    %cst_21 = arith.constant 0.000000e+00 : f32
    %37 = vector.broadcast %cst_21 : f32 to vector<8x8x32xf32>
    %38 = arith.subf %37, %36 : vector<8x8x32xf32>
    %39 = math.exp %38 : vector<8x8x32xf32>
    %40 = math.log1p %39 : vector<8x8x32xf32>
    %41 = arith.addf %35, %40 : vector<8x8x32xf32>
    %cst_22 = arith.constant 0.693147182 : f32
    %42 = vector.broadcast %cst_22 : f32 to vector<8x8x32xf32>
    %43 = arith.subf %41, %42 : vector<8x8x32xf32>
    %c0_23 = arith.constant 0 : index
    %c0_24 = arith.constant 0 : index
    %44 = vector.load %arg7[%c0_23, %c0_24] : memref<32x32xf32, #tpu.memory_space<vmem>>, vector<32x32xf32>
    %c0_25 = arith.constant 0 : index
    %c0_26 = arith.constant 0 : index
    %45 = vector.load %arg8[%c0_25, %c0_26] : memref<1x32xf32, #tpu.memory_space<vmem>>, vector<1x32xf32>
    %c0_27 = arith.constant 0 : index
    %c0_28 = arith.constant 0 : index
    %46 = vector.load %arg9[%c0_27, %c0_28] : memref<32x32xf32, #tpu.memory_space<vmem>>, vector<32x32xf32>
    %c0_29 = arith.constant 0 : index
    %c0_30 = arith.constant 0 : index
    %47 = vector.load %arg10[%c0_29, %c0_30] : memref<1x32xf32, #tpu.memory_space<vmem>>, vector<1x32xf32>
    "tpu.trace_start"() <{level = 10 : i32, message = "gij,gjf->gif"}> : () -> ()
    %cst_31 = arith.constant dense<0.000000e+00> : vector<8x8x32xf32>
    %48 = tpu.matmul %0, %43, %cst_31 {dimension_numbers = #tpu.dot_dimension_numbers<[2], [1], [1], [2], [0, 0, 0, 1, 1, 2], [0], [0]>} : vector<8x8x8xf32>, vector<8x8x32xf32>, vector<8x8x32xf32> -> vector<8x8x32xf32>
    "tpu.trace_stop"() : () -> ()
    %49 = vector.shape_cast %48 : vector<8x8x32xf32> to vector<64x32xf32>
    %cst_32 = arith.constant dense<0.000000e+00> : vector<64x32xf32>
    %50 = tpu.matmul %49, %44, %cst_32 {dimension_numbers = #tpu.dot_dimension_numbers<[1], [0], [0], [1], [0, 0, 1, 1], [], []>} : vector<64x32xf32>, vector<32x32xf32>, vector<64x32xf32> -> vector<64x32xf32>
    %51 = vector.broadcast %45 : vector<1x32xf32> to vector<64x32xf32>
    %52 = arith.addf %50, %51 : vector<64x32xf32>
    %cst_33 = arith.constant 0.000000e+00 : f32
    %53 = vector.broadcast %cst_33 : f32 to vector<64x32xf32>
    %54 = arith.maximumf %52, %53 : vector<64x32xf32>
    %55 = math.absf %52 : vector<64x32xf32>
    %cst_34 = arith.constant 0.000000e+00 : f32
    %56 = vector.broadcast %cst_34 : f32 to vector<64x32xf32>
    %57 = arith.subf %56, %55 : vector<64x32xf32>
    %58 = math.exp %57 : vector<64x32xf32>
    %59 = math.log1p %58 : vector<64x32xf32>
    %60 = arith.addf %54, %59 : vector<64x32xf32>
    %cst_35 = arith.constant dense<0.000000e+00> : vector<64x32xf32>
    %61 = tpu.matmul %60, %46, %cst_35 {dimension_numbers = #tpu.dot_dimension_numbers<[1], [0], [0], [1], [0, 0, 1, 1], [], []>} : vector<64x32xf32>, vector<32x32xf32>, vector<64x32xf32> -> vector<64x32xf32>
    %62 = vector.broadcast %47 : vector<1x32xf32> to vector<64x32xf32>
    %63 = arith.addf %61, %62 : vector<64x32xf32>
    %cst_36 = arith.constant 0.000000e+00 : f32
    %64 = vector.broadcast %cst_36 : f32 to vector<64x32xf32>
    %65 = arith.maximumf %63, %64 : vector<64x32xf32>
    %66 = math.absf %63 : vector<64x32xf32>
    %cst_37 = arith.constant 0.000000e+00 : f32
    %67 = vector.broadcast %cst_37 : f32 to vector<64x32xf32>
    %68 = arith.subf %67, %66 : vector<64x32xf32>
    %69 = math.exp %68 : vector<64x32xf32>
    %70 = math.log1p %69 : vector<64x32xf32>
    %71 = arith.addf %65, %70 : vector<64x32xf32>
    %cst_38 = arith.constant 0.693147182 : f32
    %72 = vector.broadcast %cst_38 : f32 to vector<64x32xf32>
    %73 = arith.subf %71, %72 : vector<64x32xf32>
    %74 = vector.shape_cast %73 : vector<64x32xf32> to vector<8x8x32xf32>
    %75 = arith.addf %43, %74 : vector<8x8x32xf32>
    %c0_39 = arith.constant 0 : index
    %c0_40 = arith.constant 0 : index
    %c0_41 = arith.constant 0 : index
    %76 = vector.load %arg11[%c0_39, %c0_40, %c0_41] : memref<8x8x32xf32, #tpu.memory_space<vmem>>, vector<8x8x32xf32>
    tpu.vector_store %arg11[%c0_39, %c0_40, %c0_41], %75 {strides = array<i32>} : memref<8x8x32xf32, #tpu.memory_space<vmem>>, vector<8x8x32xf32>,
    return
  }
  func.func @transform_0(%arg0: i32) -> (i32, i32, i32) {
    %c0_i32 = arith.constant 0 : i32
    %c0_i32_0 = arith.constant 0 : i32
    %c0_i32_1 = arith.constant 0 : i32
    return %arg0, %c0_i32, %c0_i32_0 : i32, i32, i32
  }
  func.func @transform_1(%arg0: i32) -> (i32, i32, i32) {
    %c0_i32 = arith.constant 0 : i32
    %c0_i32_0 = arith.constant 0 : i32
    %c0_i32_1 = arith.constant 0 : i32
    return %arg0, %c0_i32, %c0_i32_0 : i32, i32, i32
  }
  func.func @transform_2(%arg0: i32) -> (i32, i32) {
    %c0_i32 = arith.constant 0 : i32
    %c0_i32_0 = arith.constant 0 : i32
    %c0_i32_1 = arith.constant 0 : i32
    return %c0_i32, %c0_i32_0 : i32, i32
  }
  func.func @transform_3(%arg0: i32) -> (i32, i32) {
    %c0_i32 = arith.constant 0 : i32
    %c0_i32_0 = arith.constant 0 : i32
    %c0_i32_1 = arith.constant 0 : i32
    return %c0_i32, %c0_i32_0 : i32, i32
  }
  func.func @transform_4(%arg0: i32) -> (i32, i32) {
    %c0_i32 = arith.constant 0 : i32
    %c0_i32_0 = arith.constant 0 : i32
    %c0_i32_1 = arith.constant 0 : i32
    return %c0_i32, %c0_i32_0 : i32, i32
  }
  func.func @transform_5(%arg0: i32) -> (i32, i32) {
    %c0_i32 = arith.constant 0 : i32
    %c0_i32_0 = arith.constant 0 : i32
    %c0_i32_1 = arith.constant 0 : i32
    return %c0_i32, %c0_i32_0 : i32, i32
  }
  func.func @transform_6(%arg0: i32) -> (i32, i32) {
    %c0_i32 = arith.constant 0 : i32
    %c0_i32_0 = arith.constant 0 : i32
    %c0_i32_1 = arith.constant 0 : i32
    return %c0_i32, %c0_i32_0 : i32, i32
  }
  func.func @transform_7(%arg0: i32) -> (i32, i32) {
    %c0_i32 = arith.constant 0 : i32
    %c0_i32_0 = arith.constant 0 : i32
    %c0_i32_1 = arith.constant 0 : i32
    return %c0_i32, %c0_i32_0 : i32, i32
  }
  func.func @transform_8(%arg0: i32) -> (i32, i32) {
    %c0_i32 = arith.constant 0 : i32
    %c0_i32_0 = arith.constant 0 : i32
    %c0_i32_1 = arith.constant 0 : i32
    return %c0_i32, %c0_i32_0 : i32, i32
  }
  func.func @transform_9(%arg0: i32) -> (i32, i32) {
    %c0_i32 = arith.constant 0 : i32
    %c0_i32_0 = arith.constant 0 : i32
    %c0_i32_1 = arith.constant 0 : i32
    return %c0_i32, %c0_i32_0 : i32, i32
  }
  func.func @transform_10(%arg0: i32) -> (i32, i32, i32) {
    %c0_i32 = arith.constant 0 : i32
    %c0_i32_0 = arith.constant 0 : i32
    %c0_i32_1 = arith.constant 0 : i32
    return %arg0, %c0_i32, %c0_i32_0 : i32, i32, i32
  }
}

</mosaic_0001>

<llo_original>
// kernel: update_x_pallas.1
$region0: #{update_x_pallas.1}
  #allocation0 [shape = 'u32[]', space=smem, size = 0x4, offset = 0x4, fixed_abs, tag = 'smem constant byte address 0x4 - core index']
  #allocation1 [shape = 'u32[144,128]{1,0:T(1,128)}', space=vmem, size = 0x12000, scoped, tag = 'internal scratch']
  %s0 = inlined_call_operand.vmem [shape: f32[16,8,32], index: 0, kind: input, shape index: {}]
  %s1 = inlined_call_operand.vmem [shape: f32[16,8,8], index: 1, kind: input, shape index: {}]
  %s2 = inlined_call_operand.vmem [shape: f32[32,32], index: 2, kind: input, shape index: {}]
  %s3 = inlined_call_operand.vmem [shape: f32[1,32], index: 3, kind: input, shape index: {}]
  %s4 = inlined_call_operand.vmem [shape: f32[32,32], index: 4, kind: input, shape index: {}]
  %s5 = inlined_call_operand.vmem [shape: f32[1,32], index: 5, kind: input, shape index: {}]
  %s6 = inlined_call_operand.vmem [shape: f32[32,32], index: 6, kind: input, shape index: {}]
  %s7 = inlined_call_operand.vmem [shape: f32[1,32], index: 7, kind: input, shape index: {}]
  %s8 = inlined_call_operand.vmem [shape: f32[32,32], index: 8, kind: input, shape index: {}]
  %s9 = inlined_call_operand.vmem [shape: f32[1,32], index: 9, kind: input, shape index: {}]
  %s10 = inlined_call_operand.hbm [shape: f32[16,8,32], index: 10, kind: output, shape index: {}]
  %s11 = sld [smem:[#allocation0]]
  $region73: #{update_x_pallas.1} parent=0
    _
  %s13 = ssub.s32 1, %s11
  %s14 = scalar_select 0, %s13, %s11
  $region1: #{update_x_pallas.1} parent=0
    #allocation2 [shape = 'u8[65536]{0}', space=vmem, size = 0x10000, scoped, tag = 'output window, operand 0']
    #allocation3 [shape = 's32[2]{0}', space=sflag, size = 0x8, scoped, tag = 'scoped memory for update_x_pallas.1']
    %15 = vsyncpa [#allocation3], 0
    %s16 = scalar_lea.sflag [#allocation3], 1
    %17 = vsyncpa %s16, 0
    loop: start=0, step=1, limit=4
    $region2: #{update_x_pallas.1} parent=1 // loop_pre_header
      _
    $region3: #{update_x_pallas.1} parent=1 // loop_header
      %s19 = sphi 0, %s23
      %p20 = scmp.ge.s32.totalorder %s19, 4
      %s29 = sphi 0, %s31
      %s32 = sphi 0, %s29
      %s33 = sphi 0, %s32
      %s49 = sphi 0, %s33
      %s55 = sphi 0, %s57
      %s58 = sphi 0, %s55
      %s59 = sphi 0, %s58
      %s75 = sphi 0, %s59
      %s79 = sphi 0, %s79
      %s81 = sphi 0, %s79
      %s82 = sphi 0, %s81
      %s96 = sphi 0, %s82
      %s100 = sphi 0, %s100
      %s102 = sphi 0, %s100
      %s103 = sphi 0, %s102
      %s117 = sphi 0, %s103
      %s121 = sphi 0, %s121
      %s123 = sphi 0, %s121
      %s124 = sphi 0, %s123
      %s138 = sphi 0, %s124
      %s142 = sphi 0, %s142
      %s144 = sphi 0, %s142
      %s145 = sphi 0, %s144
      %s159 = sphi 0, %s145
      %s163 = sphi 0, %s163
      %s165 = sphi 0, %s163
      %s166 = sphi 0, %s165
      %s180 = sphi 0, %s166
      %s184 = sphi 0, %s184
      %s186 = sphi 0, %s184
      %s187 = sphi 0, %s186
      %s201 = sphi 0, %s187
      %s205 = sphi 0, %s205
      %s207 = sphi 0, %s205
      %s208 = sphi 0, %s207
      %s222 = sphi 0, %s208
      %s226 = sphi 0, %s226
      %s228 = sphi 0, %s226
      %s229 = sphi 0, %s228
      %s243 = sphi 0, %s229
      %s249 = sphi 0, %s251
      %s252 = sphi 0, %s249
      %s253 = sphi 0, %s252
      %s269 = sphi 0, %s253
    $region4: #{update_x_pallas.1} parent=1 // loop_header_branch
      %22 = sbr.rel (%p20) target = $region8
    $region5: #{update_x_pallas.1} parent=1 // loop_body
      %s24 = ssub.s32 %s19, 1
      %s25 = ssub.s32 %s19, 2
      %s26 = sadd.s32 %s19, 1
      %s27 = ssub.s32 %s19, %s26
      %p28 = scmp.eq.s32.totalorder %s27, 0
      %s30 = sadd.s32 %s29, 1
      %s31 = scalar_select %p28, %s29, %s30
      %p34 = pneg %p28
      %p35 = scmp.eq.s32.totalorder %s19, 1
      %p36 = por %p34, %p35
      %p37 = scmp.ne.s32.totalorder %s29, %s32
      %p38 = scmp.eq.s32.totalorder %s19, 0
      %p39 = por %p37, %p38
      %p40 = scmp.ne.s32.totalorder %s29, %s32
      %p41 = scmp.eq.s32.totalorder %s24, 1
      %p42 = por %p40, %p41
      %p43 = scmp.ne.s32.totalorder %s32, %s33
      %p44 = scmp.eq.s32.totalorder %s24, 0
      %p45 = por %p43, %p44
      %p46 = scmp.ne.s32.totalorder %s32, %s33
      %p47 = scmp.eq.s32.totalorder %s25, 1
      %p48 = por %p46, %p47
      %p50 = scmp.ne.s32.totalorder %s33, %s49
      %p51 = scmp.eq.s32.totalorder %s25, 0
      %p52 = por %p50, %p51
      %s53 = ssub.s32 %s19, %s26
      %p54 = scmp.eq.s32.totalorder %s53, 0
      %s56 = sadd.s32 %s55, 1
      %s57 = scalar_select %p54, %s55, %s56
      %p60 = pneg %p54
      %p61 = scmp.eq.s32.totalorder %s19, 1
      %p62 = por %p60, %p61
      %p63 = scmp.ne.s32.totalorder %s55, %s58
      %p64 = scmp.eq.s32.totalorder %s19, 0
      %p65 = por %p63, %p64
      %p66 = scmp.ne.s32.totalorder %s55, %s58
      %p67 = scmp.eq.s32.totalorder %s24, 1
      %p68 = por %p66, %p67
      %p69 = scmp.ne.s32.totalorder %s58, %s59
      %p70 = scmp.eq.s32.totalorder %s24, 0
      %p71 = por %p69, %p70
      %p72 = scmp.ne.s32.totalorder %s58, %s59
      %p73 = scmp.eq.s32.totalorder %s25, 1
      %p74 = por %p72, %p73
      %p76 = scmp.ne.s32.totalorder %s59, %s75
      %p77 = scmp.eq.s32.totalorder %s25, 0
      %p78 = por %p76, %p77
      %s80 = sadd.s32 %s79, 1
      %p83 = scmp.eq.s32.totalorder %s19, 1
      %p84 = scmp.ne.s32.totalorder %s79, %s81
      %p85 = scmp.eq.s32.totalorder %s19, 0
      %p86 = por %p84, %p85
      %p87 = scmp.ne.s32.totalorder %s79, %s81
      %p88 = scmp.eq.s32.totalorder %s24, 1
      %p89 = por %p87, %p88
      %p90 = scmp.ne.s32.totalorder %s81, %s82
      %p91 = scmp.eq.s32.totalorder %s24, 0
      %p92 = por %p90, %p91
      %p93 = scmp.ne.s32.totalorder %s81, %s82
      %p94 = scmp.eq.s32.totalorder %s25, 1
      %p95 = por %p93, %p94
      %p97 = scmp.ne.s32.totalorder %s82, %s96
      %p98 = scmp.eq.s32.totalorder %s25, 0
      %p99 = por %p97, %p98
      %s101 = sadd.s32 %s100, 1
      %p104 = scmp.eq.s32.totalorder %s19, 1
      %p105 = scmp.ne.s32.totalorder %s100, %s102
      %p106 = scmp.eq.s32.totalorder %s19, 0
      %p107 = por %p105, %p106
      %p108 = scmp.ne.s32.totalorder %s100, %s102
      %p109 = scmp.eq.s32.totalorder %s24, 1
      %p110 = por %p108, %p109
      %p111 = scmp.ne.s32.totalorder %s102, %s103
      %p112 = scmp.eq.s32.totalorder %s24, 0
      %p113 = por %p111, %p112
      %p114 = scmp.ne.s32.totalorder %s102, %s103
      %p115 = scmp.eq.s32.totalorder %s25, 1
      %p116 = por %p114, %p115
      %p118 = scmp.ne.s32.totalorder %s103, %s117
      %p119 = scmp.eq.s32.totalorder %s25, 0
      %p120 = por %p118, %p119
      %s122 = sadd.s32 %s121, 1
      %p125 = scmp.eq.s32.totalorder %s19, 1
      %p126 = scmp.ne.s32.totalorder %s121, %s123
      %p127 = scmp.eq.s32.totalorder %s19, 0
      %p128 = por %p126, %p127
      %p129 = scmp.ne.s32.totalorder %s121, %s123
      %p130 = scmp.eq.s32.totalorder %s24, 1
      %p131 = por %p129, %p130
      %p132 = scmp.ne.s32.totalorder %s123, %s124
      %p133 = scmp.eq.s32.totalorder %s24, 0
      %p134 = por %p132, %p133
      %p135 = scmp.ne.s32.totalorder %s123, %s124
      %p136 = scmp.eq.s32.totalorder %s25, 1
      %p137 = por %p135, %p136
      %p139 = scmp.ne.s32.totalorder %s124, %s138
      %p140 = scmp.eq.s32.totalorder %s25, 0
      %p141 = por %p139, %p140
      %s143 = sadd.s32 %s142, 1
      %p146 = scmp.eq.s32.totalorder %s19, 1
      %p147 = scmp.ne.s32.totalorder %s142, %s144
      %p148 = scmp.eq.s32.totalorder %s19, 0
      %p149 = por %p147, %p148
      %p150 = scmp.ne.s32.totalorder %s142, %s144
      %p151 = scmp.eq.s32.totalorder %s24, 1
      %p152 = por %p150, %p151
      %p153 = scmp.ne.s32.totalorder %s144, %s145
      %p154 = scmp.eq.s32.totalorder %s24, 0
      %p155 = por %p153, %p154
      %p156 = scmp.ne.s32.totalorder %s144, %s145
      %p157 = scmp.eq.s32.totalorder %s25, 1
      %p158 = por %p156, %p157
      %p160 = scmp.ne.s32.totalorder %s145, %s159
      %p161 = scmp.eq.s32.totalorder %s25, 0
      %p162 = por %p160, %p161
      %s164 = sadd.s32 %s163, 1
      %p167 = scmp.eq.s32.totalorder %s19, 1
      %p168 = scmp.ne.s32.totalorder %s163, %s165
      %p169 = scmp.eq.s32.totalorder %s19, 0
      %p170 = por %p168, %p169
      %p171 = scmp.ne.s32.totalorder %s163, %s165
      %p172 = scmp.eq.s32.totalorder %s24, 1
      %p173 = por %p171, %p172
      %p174 = scmp.ne.s32.totalorder %s165, %s166
      %p175 = scmp.eq.s32.totalorder %s24, 0
      %p176 = por %p174, %p175
      %p177 = scmp.ne.s32.totalorder %s165, %s166
      %p178 = scmp.eq.s32.totalorder %s25, 1
      %p179 = por %p177, %p178
      %p181 = scmp.ne.s32.totalorder %s166, %s180
      %p182 = scmp.eq.s32.totalorder %s25, 0
      %p183 = por %p181, %p182
      %s185 = sadd.s32 %s184, 1
      %p188 = scmp.eq.s32.totalorder %s19, 1
      %p189 = scmp.ne.s32.totalorder %s184, %s186
      %p190 = scmp.eq.s32.totalorder %s19, 0
      %p191 = por %p189, %p190
      %p192 = scmp.ne.s32.totalorder %s184, %s186
      %p193 = scmp.eq.s32.totalorder %s24, 1
      %p194 = por %p192, %p193
      %p195 = scmp.ne.s32.totalorder %s186, %s187
      %p196 = scmp.eq.s32.totalorder %s24, 0
      %p197 = por %p195, %p196
      %p198 = scmp.ne.s32.totalorder %s186, %s187
      %p199 = scmp.eq.s32.totalorder %s25, 1
      %p200 = por %p198, %p199
      %p202 = scmp.ne.s32.totalorder %s187, %s201
      %p203 = scmp.eq.s32.totalorder %s25, 0
      %p204 = por %p202, %p203
      %s206 = sadd.s32 %s205, 1
      %p209 = scmp.eq.s32.totalorder %s19, 1
      %p210 = scmp.ne.s32.totalorder %s205, %s207
      %p211 = scmp.eq.s32.totalorder %s19, 0
      %p212 = por %p210, %p211
      %p213 = scmp.ne.s32.totalorder %s205, %s207
      %p214 = scmp.eq.s32.totalorder %s24, 1
      %p215 = por %p213, %p214
      %p216 = scmp.ne.s32.totalorder %s207, %s208
      %p217 = scmp.eq.s32.totalorder %s24, 0
      %p218 = por %p216, %p217
      %p219 = scmp.ne.s32.totalorder %s207, %s208
      %p220 = scmp.eq.s32.totalorder %s25, 1
      %p221 = por %p219, %p220
      %p223 = scmp.ne.s32.totalorder %s208, %s222
      %p224 = scmp.eq.s32.totalorder %s25, 0
      %p225 = por %p223, %p224
      %s227 = sadd.s32 %s226, 1
      %p230 = scmp.eq.s32.totalorder %s19, 1
      %p231 = scmp.ne.s32.totalorder %s226, %s228
      %p232 = scmp.eq.s32.totalorder %s19, 0
      %p233 = por %p231, %p232
      %p234 = scmp.ne.s32.totalorder %s226, %s228
      %p235 = scmp.eq.s32.totalorder %s24, 1
      %p236 = por %p234, %p235
      %p237 = scmp.ne.s32.totalorder %s228, %s229
      %p238 = scmp.eq.s32.totalorder %s24, 0
      %p239 = por %p237, %p238
      %p240 = scmp.ne.s32.totalorder %s228, %s229
      %p241 = scmp.eq.s32.totalorder %s25, 1
      %p242 = por %p240, %p241
      %p244 = scmp.ne.s32.totalorder %s229, %s243
      %p245 = scmp.eq.s32.totalorder %s25, 0
      %p246 = por %p244, %p245
      %s247 = ssub.s32 %s19, %s26
      %p248 = scmp.eq.s32.totalorder %s247, 0
      %s250 = sadd.s32 %s249, 1
      %s251 = scalar_select %p248, %s249, %s250
      %p254 = pneg %p248
      %p255 = scmp.eq.s32.totalorder %s19, 1
      %p256 = por %p254, %p255
      %p257 = scmp.ne.s32.totalorder %s249, %s252
      %p258 = scmp.eq.s32.totalorder %s19, 0
      %p259 = por %p257, %p258
      %p260 = scmp.ne.s32.totalorder %s249, %s252
      %p261 = scmp.eq.s32.totalorder %s24, 1
      %p262 = por %p260, %p261
      %p263 = scmp.ne.s32.totalorder %s252, %s253
      %p264 = scmp.eq.s32.totalorder %s24, 0
      %p265 = por %p263, %p264
      %p266 = scmp.ne.s32.totalorder %s252, %s253
      %p267 = scmp.eq.s32.totalorder %s25, 1
      %p268 = por %p266, %p267
      %p270 = scmp.ne.s32.totalorder %s253, %s269
      %p271 = scmp.eq.s32.totalorder %s25, 0
      %p272 = por %p270, %p271
      %p273 = scmp.le.s32.totalorder 1, %s19
      %p274 = scmp.lt.s32.totalorder %s19, 3
      %p275 = pnand %p273, %p274
      %p276 = pneg %p275
      // Predicated region
      $region9: #{update_x_pallas.1} parent=5 // pred_check
        _
      $region10: #{update_x_pallas.1} parent=5 // pred_check_branch
        %278 = sbr.rel (%p275) target = $region12
      $region11: #{update_x_pallas.1} parent=5 // pred_region
        %s279 = ssub.s32 %s19, 1
        // Predicated region
        $region13: #{update_x_pallas.1} parent=11 // pred_check
          %p280 = pneg %p92
        $region14: #{update_x_pallas.1} parent=11 // pred_check_branch
          %282 = sbr.rel (%p280) target = $region16
        $region15: #{update_x_pallas.1} parent=11 // pred_region
          _
        $region16: #{update_x_pallas.1} parent=11 // pred_fallthru
          _
        // Predicated region
        $region17: #{update_x_pallas.1} parent=11 // pred_check
          %p283 = pneg %p113
        $region18: #{update_x_pallas.1} parent=11 // pred_check_branch
          %285 = sbr.rel (%p283) target = $region20
        $region19: #{update_x_pallas.1} parent=11 // pred_region
          _
        $region20: #{update_x_pallas.1} parent=11 // pred_fallthru
          _
        // Predicated region
        $region21: #{update_x_pallas.1} parent=11 // pred_check
          %p286 = pneg %p134
        $region22: #{update_x_pallas.1} parent=11 // pred_check_branch
          %288 = sbr.rel (%p286) target = $region24
        $region23: #{update_x_pallas.1} parent=11 // pred_region
          _
        $region24: #{update_x_pallas.1} parent=11 // pred_fallthru
          _
        // Predicated region
        $region25: #{update_x_pallas.1} parent=11 // pred_check
          %p289 = pneg %p155
        $region26: #{update_x_pallas.1} parent=11 // pred_check_branch
          %291 = sbr.rel (%p289) target = $region28
        $region27: #{update_x_pallas.1} parent=11 // pred_region
          _
        $region28: #{update_x_pallas.1} parent=11 // pred_fallthru
          _
        // Predicated region
        $region29: #{update_x_pallas.1} parent=11 // pred_check
          %p292 = pneg %p176
        $region30: #{update_x_pallas.1} parent=11 // pred_check_branch
          %294 = sbr.rel (%p292) target = $region32
        $region31: #{update_x_pallas.1} parent=11 // pred_region
          _
        $region32: #{update_x_pallas.1} parent=11 // pred_fallthru
          _
        // Predicated region
        $region33: #{update_x_pallas.1} parent=11 // pred_check
          %p295 = pneg %p197
        $region34: #{update_x_pallas.1} parent=11 // pred_check_branch
          %297 = sbr.rel (%p295) target = $region36
        $region35: #{update_x_pallas.1} parent=11 // pred_region
          _
        $region36: #{update_x_pallas.1} parent=11 // pred_fallthru
          _
        // Predicated region
        $region37: #{update_x_pallas.1} parent=11 // pred_check
          %p298 = pneg %p218
        $region38: #{update_x_pallas.1} parent=11 // pred_check_branch
          %300 = sbr.rel (%p298) target = $region40
        $region39: #{update_x_pallas.1} parent=11 // pred_region
          _
        $region40: #{update_x_pallas.1} parent=11 // pred_fallthru
          _
        // Predicated region
        $region41: #{update_x_pallas.1} parent=11 // pred_check
          %p301 = pneg %p239
        $region42: #{update_x_pallas.1} parent=11 // pred_check_branch
          %303 = sbr.rel (%p301) target = $region44
        $region43: #{update_x_pallas.1} parent=11 // pred_region
          _
        $region44: #{update_x_pallas.1} parent=11 // pred_fallthru
          _
      $region12: #{update_x_pallas.1} parent=5 // pred_fallthru
        _
      %p304 = scmp.lt.s32.totalorder %s19, 2
      // Predicated region
      $region45: #{update_x_pallas.1} parent=5 // pred_check
        %p305 = pneg %p304
      $region46: #{update_x_pallas.1} parent=5 // pred_check_branch
        %307 = sbr.rel (%p305) target = $region48
      $region47: #{update_x_pallas.1} parent=5 // pred_region
        // Predicated region
        $region49: #{update_x_pallas.1} parent=47 // pred_check
          %p308 = pneg %p39
        $region50: #{update_x_pallas.1} parent=47 // pred_check_branch
          %310 = sbr.rel (%p308) target = $region52
        $region51: #{update_x_pallas.1} parent=47 // pred_region
          %s311 = smul.u32 8, %s19
          %p312 = scmp.lt.s32.totalorder %s311, 15
          %s313 = scalar_select %p312, %s311, 15
          %s314 = smul.addr %s313, 8
          %s315 = scalar_lea.vmem %s0, %s314
          %s316 = smul.u32 8, %s19
        $region52: #{update_x_pallas.1} parent=47 // pred_fallthru
          _
        // Predicated region
        $region53: #{update_x_pallas.1} parent=47 // pred_check
          %p317 = pneg %p65
        $region54: #{update_x_pallas.1} parent=47 // pred_check_branch
          %319 = sbr.rel (%p317) target = $region56
        $region55: #{update_x_pallas.1} parent=47 // pred_region
          %s320 = smul.u32 8, %s19
          %p321 = scmp.lt.s32.totalorder %s320, 15
          %s322 = scalar_select %p321, %s320, 15
          %s323 = smul.addr %s322, 8
          %s324 = scalar_lea.vmem %s1, %s323
          %s325 = smul.u32 8, %s19
        $region56: #{update_x_pallas.1} parent=47 // pred_fallthru
          _
      $region48: #{update_x_pallas.1} parent=5 // pred_fallthru
        _
      %p326 = scmp.le.s32.totalorder 1, %s19
      %p327 = scmp.lt.s32.totalorder %s19, 3
      %p328 = pnand %p326, %p327
      %p329 = pneg %p328
      // Predicated region
      $region57: #{update_x_pallas.1} parent=5 // pred_check
        _
      $region58: #{update_x_pallas.1} parent=5 // pred_check_branch
        %331 = sbr.rel (%p328) target = $region60
      $region59: #{update_x_pallas.1} parent=5 // pred_region
        %s332 = ssub.s32 %s19, 1
        %s333 = smul.u32 8, %s24
        %p334 = scmp.lt.s32.totalorder %s333, 15
        %s335 = scalar_select %p334, %s333, 15
        %s336 = smul.addr %s335, 8
        %s337 = scalar_lea.vmem %s0, %s336
        %p338 = pneg %p45
        %p339 = pneg %p42
        %s340 = smul.u32 8, %s24
        %p341 = scmp.lt.s32.totalorder %s340, 15
        %s342 = scalar_select %p341, %s340, 15
        %s343 = smul.addr %s342, 8
        %s344 = scalar_lea.vmem %s1, %s343
        %p345 = pneg %p71
        %p346 = pneg %p68
        %p347 = pneg %p92
        %p348 = pneg %p89
        %p349 = pneg %p113
        %p350 = pneg %p110
        %p351 = pneg %p134
        %p352 = pneg %p131
        %p353 = pneg %p155
        %p354 = pneg %p152
        %p355 = pneg %p176
        %p356 = pneg %p173
        %p357 = pneg %p197
        %p358 = pneg %p194
        %p359 = pneg %p218
        %p360 = pneg %p215
        %p361 = pneg %p239
        %p362 = pneg %p236
        %p363 = pneg %p265
        %p364 = pneg %p262
        %s365 = sand.u32 %s252, 1
        %s366 = scalar_lea.sflag [#allocation3], %s365
        %s367 = sand.u32 %s252, 1
        %s368 = smul.addr %s367, 64
        %s369 = scalar_lea.vmem [#allocation2], %s368
        %s370 = smul.u32 8, %s24
        %p371 = scmp.lt.s32.totalorder %s370, 15
        %s372 = scalar_select %p371, %s370, 15
        %s373 = smul.addr %s372, 8
        %s374 = scalar_lea.vmem %s0, %s373
        %s375 = smul.u32 8, %s24
        %s376 = smul.u32 8, %s24
        %p377 = scmp.lt.s32.totalorder %s376, 15
        %s378 = scalar_select %p377, %s376, 15
        %s379 = smul.addr %s378, 8
        %s380 = scalar_lea.vmem %s1, %s379
        %s381 = smul.u32 8, %s24
        %s382 = smul.u32 8, %s24
        %v383 = vld [vmem:[%s380] sm:$0xff]
        %v384 = vld [vmem:[%s380 + $0x8] sm:$0xff]
        %v385 = vld [vmem:[%s380 + $0x10] sm:$0xff]
        %v386 = vld [vmem:[%s380 + $0x18] sm:$0xff]
        %v387 = vld [vmem:[%s380 + $0x20] sm:$0xff]
        %v388 = vld [vmem:[%s380 + $0x28] sm:$0xff]
        %v389 = vld [vmem:[%s380 + $0x30] sm:$0xff]
        %v390 = vld [vmem:[%s380 + $0x38] sm:$0xff]
        %v391 = vld [vmem:[%s374] sm:$0xff]
        %v392 = vld [vmem:[%s374 + $0x8] sm:$0xff]
        %v393 = vld [vmem:[%s374 + $0x10] sm:$0xff]
        %v394 = vld [vmem:[%s374 + $0x18] sm:$0xff]
        %v395 = vld [vmem:[%s374 + $0x20] sm:$0xff]
        %v396 = vld [vmem:[%s374 + $0x28] sm:$0xff]
        %v397 = vld [vmem:[%s374 + $0x30] sm:$0xff]
        %v398 = vld [vmem:[%s374 + $0x38] sm:$0xff]
        %v399 = vld [vmem:[%s2] sm:$0xff]
        %v400 = vld [vmem:[%s2 + $0x8] sm:$0xff]
        %v401 = vld [vmem:[%s2 + $0x10] sm:$0xff]
        %v402 = vld [vmem:[%s2 + $0x18] sm:$0xff]
        %v403 = vld [vmem:[%s3] sm:$0x1]
        %v404 = vld [vmem:[%s4] sm:$0xff]
        %v405 = vld [vmem:[%s4 + $0x8] sm:$0xff]
        %v406 = vld [vmem:[%s4 + $0x10] sm:$0xff]
        %v407 = vld [vmem:[%s4 + $0x18] sm:$0xff]
        %v408 = vld [vmem:[%s5] sm:$0x1]
        %vm409 = vcmask 64512
        %v411 = vsel %vm409, %v383, 0
        %413 = vmatprep.subr.mxu0 0.0
        %414 = vmatpush1.msra.mxu0 %v391
        %415 = vmatprep.subr.mxu0 0.0
        %416 = vmatpush1.msra.mxu0 0.0
        %417 = vmatprep.subr.mxu0 0.0
        %418 = vmatpush1.msra.mxu0 0.0
        %419 = vmatprep.subr.mxu0 0.0
        %420 = vmatpush1.msra.mxu0 0.0
        %421 = vmatprep.subr.mxu0 0.0
        %422 = vmatpush1.msra.mxu0 0.0
        %423 = vmatprep.subr.mxu0 0.0
        %424 = vmatpush1.msra.mxu0 0.0
        %425 = vmatprep.subr.mxu0 0.0
        %426 = vmatpush1.msra.mxu0 0.0
        %427 = vmatprep.subr.mxu0 0.0
        %428 = vmatpush1.msra.mxu0 0.0
        %429 = vmatprep.subr.mxu0 0.0
        %430 = vmatpush1.msra.mxu0 0.0
        %431 = vmatprep.subr.mxu0 0.0
        %432 = vmatpush1.msra.mxu0 0.0
        %433 = vmatprep.subr.mxu0 0.0
        %434 = vmatpush1.msra.mxu0 0.0
        %435 = vmatprep.subr.mxu0 0.0
        %436 = vmatpush1.msra.mxu0 0.0
        %437 = vmatprep.subr.mxu0 0.0
        %438 = vmatpush1.msra.mxu0 0.0
        %439 = vmatprep.subr.mxu0 0.0
        %440 = vmatpush1.msra.mxu0 0.0
        %441 = vmatprep.subr.mxu0 0.0
        %442 = vmatpush1.msra.mxu0 0.0
        %443 = vmatprep.subr.mxu0 0.0
        %444 = vmatpush1.msra.mxu0 0.0
        %445 = vmatprep.subr.mxu0 0.0
        %446 = vmatpush1.msra.mxu0 0.0
        %447 = vmatprep.subr.mxu0 0.0
        %448 = vmatpush1.msra.mxu0 0.0
        %449 = vmatprep.subr.mxu0 0.0
        %450 = vmatpush1.msra.mxu0 0.0
        %451 = vmatprep.subr.mxu0 0.0
        %452 = vmatpush1.msra.mxu0 0.0
        %453 = vmatprep.subr.mxu0 0.0
        %454 = vmatpush1.msra.mxu0 0.0
        %455 = vmatprep.subr.mxu0 0.0
        %456 = vmatpush1.msra.mxu0 0.0
        %457 = vmatprep.subr.mxu0 0.0
        %458 = vmatpush1.msra.mxu0 0.0
        %459 = vmatprep.subr.mxu0 0.0
        %460 = vmatpush1.msra.mxu0 0.0
        %461 = vmatprep.subr.mxu0 0.0
        %462 = vmatpush1.msra.mxu0 0.0
        %463 = vmatprep.subr.mxu0 0.0
        %464 = vmatpush1.msra.mxu0 0.0
        %465 = vmatprep.subr.mxu0 0.0
        %466 = vmatpush1.msra.mxu0 0.0
        %467 = vmatprep.subr.mxu0 0.0
        %468 = vmatpush1.msra.mxu0 0.0
        %469 = vmatprep.subr.mxu0 0.0
        %470 = vmatpush1.msra.mxu0 0.0
        %471 = vmatprep.subr.mxu0 0.0
        %472 = vmatpush1.msra.mxu0 0.0
        %473 = vmatprep.subr.mxu0 0.0
        %474 = vmatpush1.msra.mxu0 0.0
        %475 = vmatprep.subr.mxu0 0.0
        %476 = vmatpush1.msra.mxu0 0.0
        %477 = vmatprep.mubr.f32.mxu0 0.0
        %478 = vmatmul.mubr.f32.gmra.mrb[0].mxu0 %v411
        %v479 = vpop.f32.mrb[0].mxu0
        %v480 = vadd.f32 0.0, %v479
        %v481 = vpop.f32.mrb[0].mxu0
        %482 = vdwg.mxu0
        %v484 = vsel %vm409, %v384, 0
        %486 = vmatprep.subr.mxu0 0.0
        %487 = vmatpush1.msra.mxu0 %v392
        %488 = vmatprep.subr.mxu0 0.0
        %489 = vmatpush1.msra.mxu0 0.0
        %490 = vmatprep.subr.mxu0 0.0
        %491 = vmatpush1.msra.mxu0 0.0
        %492 = vmatprep.subr.mxu0 0.0
        %493 = vmatpush1.msra.mxu0 0.0
        %494 = vmatprep.subr.mxu0 0.0
        %495 = vmatpush1.msra.mxu0 0.0
        %496 = vmatprep.subr.mxu0 0.0
        %497 = vmatpush1.msra.mxu0 0.0
        %498 = vmatprep.subr.mxu0 0.0
        %499 = vmatpush1.msra.mxu0 0.0
        %500 = vmatprep.subr.mxu0 0.0
        %501 = vmatpush1.msra.mxu0 0.0
        %502 = vmatprep.subr.mxu0 0.0
        %503 = vmatpush1.msra.mxu0 0.0
        %504 = vmatprep.subr.mxu0 0.0
        %505 = vmatpush1.msra.mxu0 0.0
        %506 = vmatprep.subr.mxu0 0.0
        %507 = vmatpush1.msra.mxu0 0.0
        %508 = vmatprep.subr.mxu0 0.0
        %509 = vmatpush1.msra.mxu0 0.0
        %510 = vmatprep.subr.mxu0 0.0
        %511 = vmatpush1.msra.mxu0 0.0
        %512 = vmatprep.subr.mxu0 0.0
        %513 = vmatpush1.msra.mxu0 0.0
        %514 = vmatprep.subr.mxu0 0.0
        %515 = vmatpush1.msra.mxu0 0.0
        %516 = vmatprep.subr.mxu0 0.0
        %517 = vmatpush1.msra.mxu0 0.0
        %518 = vmatprep.subr.mxu0 0.0
        %519 = vmatpush1.msra.mxu0 0.0
        %520 = vmatprep.subr.mxu0 0.0
        %521 = vmatpush1.msra.mxu0 0.0
        %522 = vmatprep.subr.mxu0 0.0
        %523 = vmatpush1.msra.mxu0 0.0
        %524 = vmatprep.subr.mxu0 0.0
        %525 = vmatpush1.msra.mxu0 0.0
        %526 = vmatprep.subr.mxu0 0.0
        %527 = vmatpush1.msra.mxu0 0.0
        %528 = vmatprep.subr.mxu0 0.0
        %529 = vmatpush1.msra.mxu0 0.0
        %530 = vmatprep.subr.mxu0 0.0
        %531 = vmatpush1.msra.mxu0 0.0
        %532 = vmatprep.subr.mxu0 0.0
        %533 = vmatpush1.msra.mxu0 0.0
        %534 = vmatprep.subr.mxu0 0.0
        %535 = vmatpush1.msra.mxu0 0.0
        %536 = vmatprep.subr.mxu0 0.0
        %537 = vmatpush1.msra.mxu0 0.0
        %538 = vmatprep.subr.mxu0 0.0
        %539 = vmatpush1.msra.mxu0 0.0
        %540 = vmatprep.subr.mxu0 0.0
        %541 = vmatpush1.msra.mxu0 0.0
        %542 = vmatprep.subr.mxu0 0.0
        %543 = vmatpush1.msra.mxu0 0.0
        %544 = vmatprep.subr.mxu0 0.0
        %545 = vmatpush1.msra.mxu0 0.0
        %546 = vmatprep.subr.mxu0 0.0
        %547 = vmatpush1.msra.mxu0 0.0
        %548 = vmatprep.subr.mxu0 0.0
        %549 = vmatpush1.msra.mxu0 0.0
        %550 = vmatprep.mubr.f32.mxu0 0.0
        %551 = vmatmul.mubr.f32.gmra.mrb[0].mxu0 %v484
        %v552 = vpop.f32.mrb[0].mxu0
        %v553 = vadd.f32 0.0, %v552
        %v554 = vpop.f32.mrb[0].mxu0
        %555 = vdwg.mxu0
        %v557 = vsel %vm409, %v385, 0
        %559 = vmatprep.subr.mxu0 0.0
        %560 = vmatpush1.msra.mxu0 %v393
        %561 = vmatprep.subr.mxu0 0.0
        %562 = vmatpush1.msra.mxu0 0.0
        %563 = vmatprep.subr.mxu0 0.0
        %564 = vmatpush1.msra.mxu0 0.0
        %565 = vmatprep.subr.mxu0 0.0
        %566 = vmatpush1.msra.mxu0 0.0
        %567 = vmatprep.subr.mxu0 0.0
        %568 = vmatpush1.msra.mxu0 0.0
        %569 = vmatprep.subr.mxu0 0.0
        %570 = vmatpush1.msra.mxu0 0.0
        %571 = vmatprep.subr.mxu0 0.0
        %572 = vmatpush1.msra.mxu0 0.0
        %573 = vmatprep.subr.mxu0 0.0
        %574 = vmatpush1.msra.mxu0 0.0
        %575 = vmatprep.subr.mxu0 0.0
        %576 = vmatpush1.msra.mxu0 0.0
        %577 = vmatprep.subr.mxu0 0.0
        %578 = vmatpush1.msra.mxu0 0.0
        %579 = vmatprep.subr.mxu0 0.0
        %580 = vmatpush1.msra.mxu0 0.0
        %581 = vmatprep.subr.mxu0 0.0
        %582 = vmatpush1.msra.mxu0 0.0
        %583 = vmatprep.subr.mxu0 0.0
        %584 = vmatpush1.msra.mxu0 0.0
        %585 = vmatprep.subr.mxu0 0.0
        %586 = vmatpush1.msra.mxu0 0.0
        %587 = vmatprep.subr.mxu0 0.0
        %588 = vmatpush1.msra.mxu0 0.0
        %589 = vmatprep.subr.mxu0 0.0
        %590 = vmatpush1.msra.mxu0 0.0
        %591 = vmatprep.subr.mxu0 0.0
        %592 = vmatpush1.msra.mxu0 0.0
        %593 = vmatprep.subr.mxu0 0.0
        %594 = vmatpush1.msra.mxu0 0.0
        %595 = vmatprep.subr.mxu0 0.0
        %596 = vmatpush1.msra.mxu0 0.0
        %597 = vmatprep.subr.mxu0 0.0
        %598 = vmatpush1.msra.mxu0 0.0
        %599 = vmatprep.subr.mxu0 0.0
        %600 = vmatpush1.msra.mxu0 0.0
        %601 = vmatprep.subr.mxu0 0.0
        %602 = vmatpush1.msra.mxu0 0.0
        %603 = vmatprep.subr.mxu0 0.0
        %604 = vmatpush1.msra.mxu0 0.0
        %605 = vmatprep.subr.mxu0 0.0
        %606 = vmatpush1.msra.mxu0 0.0
        %607 = vmatprep.subr.mxu0 0.0
        %608 = vmatpush1.msra.mxu0 0.0
        %609 = vmatprep.subr.mxu0 0.0
        %610 = vmatpush1.msra.mxu0 0.0
        %611 = vmatprep.subr.mxu0 0.0
        %612 = vmatpush1.msra.mxu0 0.0
        %613 = vmatprep.subr.mxu0 0.0
        %614 = vmatpush1.msra.mxu0 0.0
        %615 = vmatprep.subr.mxu0 0.0
        %616 = vmatpush1.msra.mxu0 0.0
        %617 = vmatprep.subr.mxu0 0.0
        %618 = vmatpush1.msra.mxu0 0.0
        %619 = vmatprep.subr.mxu0 0.0
        %620 = vmatpush1.msra.mxu0 0.0
        %621 = vmatprep.subr.mxu0 0.0
        %622 = vmatpush1.msra.mxu0 0.0
        %623 = vmatprep.mubr.f32.mxu0 0.0
        %624 = vmatmul.mubr.f32.gmra.mrb[0].mxu0 %v557
        %v625 = vpop.f32.mrb[0].mxu0
        %v626 = vadd.f32 0.0, %v625
        %v627 = vpop.f32.mrb[0].mxu0
        %628 = vdwg.mxu0
        %v630 = vsel %vm409, %v386, 0
        %632 = vmatprep.subr.mxu0 0.0
        %633 = vmatpush1.msra.mxu0 %v394
        %634 = vmatprep.subr.mxu0 0.0
        %635 = vmatpush1.msra.mxu0 0.0
        %636 = vmatprep.subr.mxu0 0.0
        %637 = vmatpush1.msra.mxu0 0.0
        %638 = vmatprep.subr.mxu0 0.0
        %639 = vmatpush1.msra.mxu0 0.0
        %640 = vmatprep.subr.mxu0 0.0
        %641 = vmatpush1.msra.mxu0 0.0
        %642 = vmatprep.subr.mxu0 0.0
        %643 = vmatpush1.msra.mxu0 0.0
        %644 = vmatprep.subr.mxu0 0.0
        %645 = vmatpush1.msra.mxu0 0.0
        %646 = vmatprep.subr.mxu0 0.0
        %647 = vmatpush1.msra.mxu0 0.0
        %648 = vmatprep.subr.mxu0 0.0
        %649 = vmatpush1.msra.mxu0 0.0
        %650 = vmatprep.subr.mxu0 0.0
        %651 = vmatpush1.msra.mxu0 0.0
        %652 = vmatprep.subr.mxu0 0.0
        %653 = vmatpush1.msra.mxu0 0.0
        %654 = vmatprep.subr.mxu0 0.0
        %655 = vmatpush1.msra.mxu0 0.0
        %656 = vmatprep.subr.mxu0 0.0
        %657 = vmatpush1.msra.mxu0 0.0
        %658 = vmatprep.subr.mxu0 0.0
        %659 = vmatpush1.msra.mxu0 0.0
        %660 = vmatprep.subr.mxu0 0.0
        %661 = vmatpush1.msra.mxu0 0.0
        %662 = vmatprep.subr.mxu0 0.0
        %663 = vmatpush1.msra.mxu0 0.0
        %664 = vmatprep.subr.mxu0 0.0
        %665 = vmatpush1.msra.mxu0 0.0
        %666 = vmatprep.subr.mxu0 0.0
        %667 = vmatpush1.msra.mxu0 0.0
        %668 = vmatprep.subr.mxu0 0.0
        %669 = vmatpush1.msra.mxu0 0.0
        %670 = vmatprep.subr.mxu0 0.0
        %671 = vmatpush1.msra.mxu0 0.0
        %672 = vmatprep.subr.mxu0 0.0
        %673 = vmatpush1.msra.mxu0 0.0
        %674 = vmatprep.subr.mxu0 0.0
        %675 = vmatpush1.msra.mxu0 0.0
        %676 = vmatprep.subr.mxu0 0.0
        %677 = vmatpush1.msra.mxu0 0.0
        %678 = vmatprep.subr.mxu0 0.0
        %679 = vmatpush1.msra.mxu0 0.0
        %680 = vmatprep.subr.mxu0 0.0
        %681 = vmatpush1.msra.mxu0 0.0
        %682 = vmatprep.subr.mxu0 0.0
        %683 = vmatpush1.msra.mxu0 0.0
        %684 = vmatprep.subr.mxu0 0.0
        %685 = vmatpush1.msra.mxu0 0.0
        %686 = vmatprep.subr.mxu0 0.0
        %687 = vmatpush1.msra.mxu0 0.0
        %688 = vmatprep.subr.mxu0 0.0
        %689 = vmatpush1.msra.mxu0 0.0
        %690 = vmatprep.subr.mxu0 0.0
        %691 = vmatpush1.msra.mxu0 0.0
        %692 = vmatprep.subr.mxu0 0.0
        %693 = vmatpush1.msra.mxu0 0.0
        %694 = vmatprep.subr.mxu0 0.0
        %695 = vmatpush1.msra.mxu0 0.0
        %696 = vmatprep.mubr.f32.mxu0 0.0
        %697 = vmatmul.mubr.f32.gmra.mrb[0].mxu0 %v630
        %v698 = vpop.f32.mrb[0].mxu0
        %v699 = vadd.f32 0.0, %v698
        %v700 = vpop.f32.mrb[0].mxu0
        %701 = vdwg.mxu0
        %v703 = vsel %vm409, %v387, 0
        %705 = vmatprep.subr.mxu0 0.0
        %706 = vmatpush1.msra.mxu0 %v395
        %707 = vmatprep.subr.mxu0 0.0
        %708 = vmatpush1.msra.mxu0 0.0
        %709 = vmatprep.subr.mxu0 0.0
        %710 = vmatpush1.msra.mxu0 0.0
        %711 = vmatprep.subr.mxu0 0.0
        %712 = vmatpush1.msra.mxu0 0.0
        %713 = vmatprep.subr.mxu0 0.0
        %714 = vmatpush1.msra.mxu0 0.0
        %715 = vmatprep.subr.mxu0 0.0
        %716 = vmatpush1.msra.mxu0 0.0
        %717 = vmatprep.subr.mxu0 0.0
        %718 = vmatpush1.msra.mxu0 0.0
        %719 = vmatprep.subr.mxu0 0.0
        %720 = vmatpush1.msra.mxu0 0.0
        %721 = vmatprep.subr.mxu0 0.0
        %722 = vmatpush1.msra.mxu0 0.0
        %723 = vmatprep.subr.mxu0 0.0
        %724 = vmatpush1.msra.mxu0 0.0
        %725 = vmatprep.subr.mxu0 0.0
        %726 = vmatpush1.msra.mxu0 0.0
        %727 = vmatprep.subr.mxu0 0.0
        %728 = vmatpush1.msra.mxu0 0.0
        %729 = vmatprep.subr.mxu0 0.0
        %730 = vmatpush1.msra.mxu0 0.0
        %731 = vmatprep.subr.mxu0 0.0
        %732 = vmatpush1.msra.mxu0 0.0
        %733 = vmatprep.subr.mxu0 0.0
        %734 = vmatpush1.msra.mxu0 0.0
        %735 = vmatprep.subr.mxu0 0.0
        %736 = vmatpush1.msra.mxu0 0.0
        %737 = vmatprep.subr.mxu0 0.0
        %738 = vmatpush1.msra.mxu0 0.0
        %739 = vmatprep.subr.mxu0 0.0
        %740 = vmatpush1.msra.mxu0 0.0
        %741 = vmatprep.subr.mxu0 0.0
        %742 = vmatpush1.msra.mxu0 0.0
        %743 = vmatprep.subr.mxu0 0.0
        %744 = vmatpush1.msra.mxu0 0.0
        %745 = vmatprep.subr.mxu0 0.0
        %746 = vmatpush1.msra.mxu0 0.0
        %747 = vmatprep.subr.mxu0 0.0
        %748 = vmatpush1.msra.mxu0 0.0
        %749 = vmatprep.subr.mxu0 0.0
        %750 = vmatpush1.msra.mxu0 0.0
        %751 = vmatprep.subr.mxu0 0.0
        %752 = vmatpush1.msra.mxu0 0.0
        %753 = vmatprep.subr.mxu0 0.0
        %754 = vmatpush1.msra.mxu0 0.0
        %755 = vmatprep.subr.mxu0 0.0
        %756 = vmatpush1.msra.mxu0 0.0
        %757 = vmatprep.subr.mxu0 0.0
        %758 = vmatpush1.msra.mxu0 0.0
        %759 = vmatprep.subr.mxu0 0.0
        %760 = vmatpush1.msra.mxu0 0.0
        %761 = vmatprep.subr.mxu0 0.0
        %762 = vmatpush1.msra.mxu0 0.0
        %763 = vmatprep.subr.mxu0 0.0
        %764 = vmatpush1.msra.mxu0 0.0
        %765 = vmatprep.subr.mxu0 0.0
        %766 = vmatpush1.msra.mxu0 0.0
        %767 = vmatprep.subr.mxu0 0.0
        %768 = vmatpush1.msra.mxu0 0.0
        %769 = vmatprep.mubr.f32.mxu0 0.0
        %770 = vmatmul.mubr.f32.gmra.mrb[0].mxu0 %v703
        %v771 = vpop.f32.mrb[0].mxu0
        %v772 = vadd.f32 0.0, %v771
        %v773 = vpop.f32.mrb[0].mxu0
        %774 = vdwg.mxu0
        %v776 = vsel %vm409, %v388, 0
        %778 = vmatprep.subr.mxu0 0.0
        %779 = vmatpush1.msra.mxu0 %v396
        %780 = vmatprep.subr.mxu0 0.0
        %781 = vmatpush1.msra.mxu0 0.0
        %782 = vmatprep.subr.mxu0 0.0
        %783 = vmatpush1.msra.mxu0 0.0
        %784 = vmatprep.subr.mxu0 0.0
        %785 = vmatpush1.msra.mxu0 0.0
        %786 = vmatprep.subr.mxu0 0.0
        %787 = vmatpush1.msra.mxu0 0.0
        %788 = vmatprep.subr.mxu0 0.0
        %789 = vmatpush1.msra.mxu0 0.0
        %790 = vmatprep.subr.mxu0 0.0
        %791 = vmatpush1.msra.mxu0 0.0
        %792 = vmatprep.subr.mxu0 0.0
        %793 = vmatpush1.msra.mxu0 0.0
        %794 = vmatprep.subr.mxu0 0.0
        %795 = vmatpush1.msra.mxu0 0.0
        %796 = vmatprep.subr.mxu0 0.0
        %797 = vmatpush1.msra.mxu0 0.0
        %798 = vmatprep.subr.mxu0 0.0
        %799 = vmatpush1.msra.mxu0 0.0
        %800 = vmatprep.subr.mxu0 0.0
        %801 = vmatpush1.msra.mxu0 0.0
        %802 = vmatprep.subr.mxu0 0.0
        %803 = vmatpush1.msra.mxu0 0.0
        %804 = vmatprep.subr.mxu0 0.0
        %805 = vmatpush1.msra.mxu0 0.0
        %806 = vmatprep.subr.mxu0 0.0
        %807 = vmatpush1.msra.mxu0 0.0
        %808 = vmatprep.subr.mxu0 0.0
        %809 = vmatpush1.msra.mxu0 0.0
        %810 = vmatprep.subr.mxu0 0.0
        %811 = vmatpush1.msra.mxu0 0.0
        %812 = vmatprep.subr.mxu0 0.0
        %813 = vmatpush1.msra.mxu0 0.0
        %814 = vmatprep.subr.mxu0 0.0
        %815 = vmatpush1.msra.mxu0 0.0
        %816 = vmatprep.subr.mxu0 0.0
        %817 = vmatpush1.msra.mxu0 0.0
        %818 = vmatprep.subr.mxu0 0.0
        %819 = vmatpush1.msra.mxu0 0.0
        %820 = vmatprep.subr.mxu0 0.0
        %821 = vmatpush1.msra.mxu0 0.0
        %822 = vmatprep.subr.mxu0 0.0
        %823 = vmatpush1.msra.mxu0 0.0
        %824 = vmatprep.subr.mxu0 0.0
        %825 = vmatpush1.msra.mxu0 0.0
        %826 = vmatprep.subr.mxu0 0.0
        %827 = vmatpush1.msra.mxu0 0.0
        %828 = vmatprep.subr.mxu0 0.0
        %829 = vmatpush1.msra.mxu0 0.0
        %830 = vmatprep.subr.mxu0 0.0
        %831 = vmatpush1.msra.mxu0 0.0
        %832 = vmatprep.subr.mxu0 0.0
        %833 = vmatpush1.msra.mxu0 0.0
        %834 = vmatprep.subr.mxu0 0.0
        %835 = vmatpush1.msra.mxu0 0.0
        %836 = vmatprep.subr.mxu0 0.0
        %837 = vmatpush1.msra.mxu0 0.0
        %838 = vmatprep.subr.mxu0 0.0
        %839 = vmatpush1.msra.mxu0 0.0
        %840 = vmatprep.subr.mxu0 0.0
        %841 = vmatpush1.msra.mxu0 0.0
        %842 = vmatprep.mubr.f32.mxu0 0.0
        %843 = vmatmul.mubr.f32.gmra.mrb[0].mxu0 %v776
        %v844 = vpop.f32.mrb[0].mxu0
        %v845 = vadd.f32 0.0, %v844
        %v846 = vpop.f32.mrb[0].mxu0
        %847 = vdwg.mxu0
        %v849 = vsel %vm409, %v389, 0
        %851 = vmatprep.subr.mxu0 0.0
        %852 = vmatpush1.msra.mxu0 %v397
        %853 = vmatprep.subr.mxu0 0.0
        %854 = vmatpush1.msra.mxu0 0.0
        %855 = vmatprep.subr.mxu0 0.0
        %856 = vmatpush1.msra.mxu0 0.0
        %857 = vmatprep.subr.mxu0 0.0
        %858 = vmatpush1.msra.mxu0 0.0
        %859 = vmatprep.subr.mxu0 0.0
        %860 = vmatpush1.msra.mxu0 0.0
        %861 = vmatprep.subr.mxu0 0.0
        %862 = vmatpush1.msra.mxu0 0.0
        %863 = vmatprep.subr.mxu0 0.0
        %864 = vmatpush1.msra.mxu0 0.0
        %865 = vmatprep.subr.mxu0 0.0
        %866 = vmatpush1.msra.mxu0 0.0
        %867 = vmatprep.subr.mxu0 0.0
        %868 = vmatpush1.msra.mxu0 0.0
        %869 = vmatprep.subr.mxu0 0.0
        %870 = vmatpush1.msra.mxu0 0.0
        %871 = vmatprep.subr.mxu0 0.0
        %872 = vmatpush1.msra.mxu0 0.0
        %873 = vmatprep.subr.mxu0 0.0
        %874 = vmatpush1.msra.mxu0 0.0
        %875 = vmatprep.subr.mxu0 0.0
        %876 = vmatpush1.msra.mxu0 0.0
        %877 = vmatprep.subr.mxu0 0.0
        %878 = vmatpush1.msra.mxu0 0.0
        %879 = vmatprep.subr.mxu0 0.0
        %880 = vmatpush1.msra.mxu0 0.0
        %881 = vmatprep.subr.mxu0 0.0
        %882 = vmatpush1.msra.mxu0 0.0
        %883 = vmatprep.subr.mxu0 0.0
        %884 = vmatpush1.msra.mxu0 0.0
        %885 = vmatprep.subr.mxu0 0.0
        %886 = vmatpush1.msra.mxu0 0.0
        %887 = vmatprep.subr.mxu0 0.0
        %888 = vmatpush1.msra.mxu0 0.0
        %889 = vmatprep.subr.mxu0 0.0
        %890 = vmatpush1.msra.mxu0 0.0
        %891 = vmatprep.subr.mxu0 0.0
        %892 = vmatpush1.msra.mxu0 0.0
        %893 = vmatprep.subr.mxu0 0.0
        %894 = vmatpush1.msra.mxu0 0.0
        %895 = vmatprep.subr.mxu0 0.0
        %896 = vmatpush1.msra.mxu0 0.0
        %897 = vmatprep.subr.mxu0 0.0
        %898 = vmatpush1.msra.mxu0 0.0
        %899 = vmatprep.subr.mxu0 0.0
        %900 = vmatpush1.msra.mxu0 0.0
        %901 = vmatprep.subr.mxu0 0.0
        %902 = vmatpush1.msra.mxu0 0.0
        %903 = vmatprep.subr.mxu0 0.0
        %904 = vmatpush1.msra.mxu0 0.0
        %905 = vmatprep.subr.mxu0 0.0
        %906 = vmatpush1.msra.mxu0 0.0
        %907 = vmatprep.subr.mxu0 0.0
        %908 = vmatpush1.msra.mxu0 0.0
        %909 = vmatprep.subr.mxu0 0.0
        %910 = vmatpush1.msra.mxu0 0.0
        %911 = vmatprep.subr.mxu0 0.0
        %912 = vmatpush1.msra.mxu0 0.0
        %913 = vmatprep.subr.mxu0 0.0
        %914 = vmatpush1.msra.mxu0 0.0
        %915 = vmatprep.mubr.f32.mxu0 0.0
        %916 = vmatmul.mubr.f32.gmra.mrb[0].mxu0 %v849
        %v917 = vpop.f32.mrb[0].mxu0
        %v918 = vadd.f32 0.0, %v917
        %v919 = vpop.f32.mrb[0].mxu0
        %920 = vdwg.mxu0
        %v922 = vsel %vm409, %v390, 0
        %924 = vmatprep.subr.mxu0 0.0
        %925 = vmatpush1.msra.mxu0 %v398
        %926 = vmatprep.subr.mxu0 0.0
        %927 = vmatpush1.msra.mxu0 0.0
        %928 = vmatprep.subr.mxu0 0.0
        %929 = vmatpush1.msra.mxu0 0.0
        %930 = vmatprep.subr.mxu0 0.0
        %931 = vmatpush1.msra.mxu0 0.0
        %932 = vmatprep.subr.mxu0 0.0
        %933 = vmatpush1.msra.mxu0 0.0
        %934 = vmatprep.subr.mxu0 0.0
        %935 = vmatpush1.msra.mxu0 0.0
        %936 = vmatprep.subr.mxu0 0.0
        %937 = vmatpush1.msra.mxu0 0.0
        %938 = vmatprep.subr.mxu0 0.0
        %939 = vmatpush1.msra.mxu0 0.0
        %940 = vmatprep.subr.mxu0 0.0
        %941 = vmatpush1.msra.mxu0 0.0
        %942 = vmatprep.subr.mxu0 0.0
        %943 = vmatpush1.msra.mxu0 0.0
        %944 = vmatprep.subr.mxu0 0.0
        %945 = vmatpush1.msra.mxu0 0.0
        %946 = vmatprep.subr.mxu0 0.0
        %947 = vmatpush1.msra.mxu0 0.0
        %948 = vmatprep.subr.mxu0 0.0
        %949 = vmatpush1.msra.mxu0 0.0
        %950 = vmatprep.subr.mxu0 0.0
        %951 = vmatpush1.msra.mxu0 0.0
        %952 = vmatprep.subr.mxu0 0.0
        %953 = vmatpush1.msra.mxu0 0.0
        %954 = vmatprep.subr.mxu0 0.0
        %955 = vmatpush1.msra.mxu0 0.0
        %956 = vmatprep.subr.mxu0 0.0
        %957 = vmatpush1.msra.mxu0 0.0
        %958 = vmatprep.subr.mxu0 0.0
        %959 = vmatpush1.msra.mxu0 0.0
        %960 = vmatprep.subr.mxu0 0.0
        %961 = vmatpush1.msra.mxu0 0.0
        %962 = vmatprep.subr.mxu0 0.0
        %963 = vmatpush1.msra.mxu0 0.0
        %964 = vmatprep.subr.mxu0 0.0
        %965 = vmatpush1.msra.mxu0 0.0
        %966 = vmatprep.subr.mxu0 0.0
        %967 = vmatpush1.msra.mxu0 0.0
        %968 = vmatprep.subr.mxu0 0.0
        %969 = vmatpush1.msra.mxu0 0.0
        %970 = vmatprep.subr.mxu0 0.0
        %971 = vmatpush1.msra.mxu0 0.0
        %972 = vmatprep.subr.mxu0 0.0
        %973 = vmatpush1.msra.mxu0 0.0
        %974 = vmatprep.subr.mxu0 0.0
        %975 = vmatpush1.msra.mxu0 0.0
        %976 = vmatprep.subr.mxu0 0.0
        %977 = vmatpush1.msra.mxu0 0.0
        %978 = vmatprep.subr.mxu0 0.0
        %979 = vmatpush1.msra.mxu0 0.0
        %980 = vmatprep.subr.mxu0 0.0
        %981 = vmatpush1.msra.mxu0 0.0
        %982 = vmatprep.subr.mxu0 0.0
        %983 = vmatpush1.msra.mxu0 0.0
        %984 = vmatprep.subr.mxu0 0.0
        %985 = vmatpush1.msra.mxu0 0.0
        %986 = vmatprep.subr.mxu0 0.0
        %987 = vmatpush1.msra.mxu0 0.0
        %988 = vmatprep.mubr.f32.mxu0 0.0
        %989 = vmatmul.mubr.f32.gmra.mrb[0].mxu0 %v922
        %v990 = vpop.f32.mrb[0].mxu0
        %v991 = vadd.f32 0.0, %v990
        %v992 = vpop.f32.mrb[0].mxu0
        %993 = vdwg.mxu0
        %v995 = vlaneseq
        %v996 = vshrl.u32 %v995, 7
        %v997 = vsub.s32 0, %v996
        %v998 = vrot.slane %v403, %v997
        %vm1000 = vcmask 261120
        %v1002 = vsel %vm1000, %v480, 0
        %v1005 = vsel %vm1000, %v553, 0
        %v1008 = vsel %vm1000, %v626, 0
        %v1011 = vsel %vm1000, %v699, 0
        %v1014 = vsel %vm1000, %v772, 0
        %v1017 = vsel %vm1000, %v845, 0
        %v1020 = vsel %vm1000, %v918, 0
        %v1023 = vsel %vm1000, %v991, 0
        %1025 = vmatprep.subr.mxu0 0.0
        %1026 = vmatpush1.msra.mxu0 %v399
        %1027 = vmatprep.subr.mxu0 0.0
        %1028 = vmatpush1.msra.mxu0 %v400
        %1029 = vmatprep.subr.mxu0 0.0
        %1030 = vmatpush1.msra.mxu0 %v401
        %1031 = vmatprep.subr.mxu0 0.0
        %1032 = vmatpush1.msra.mxu0 %v402
        %1033 = vmatprep.subr.mxu0 0.0
        %1034 = vmatpush1.msra.mxu0 0.0
        %1035 = vmatprep.subr.mxu0 0.0
        %1036 = vmatpush1.msra.mxu0 0.0
        %1037 = vmatprep.subr.mxu0 0.0
        %1038 = vmatpush1.msra.mxu0 0.0
        %1039 = vmatprep.subr.mxu0 0.0
        %1040 = vmatpush1.msra.mxu0 0.0
        %1041 = vmatprep.subr.mxu0 0.0
        %1042 = vmatpush1.msra.mxu0 0.0
        %1043 = vmatprep.subr.mxu0 0.0
        %1044 = vmatpush1.msra.mxu0 0.0
        %1045 = vmatprep.subr.mxu0 0.0
        %1046 = vmatpush1.msra.mxu0 0.0
        %1047 = vmatprep.subr.mxu0 0.0
        %1048 = vmatpush1.msra.mxu0 0.0
        %1049 = vmatprep.subr.mxu0 0.0
        %1050 = vmatpush1.msra.mxu0 0.0
        %1051 = vmatprep.subr.mxu0 0.0
        %1052 = vmatpush1.msra.mxu0 0.0
        %1053 = vmatprep.subr.mxu0 0.0
        %1054 = vmatpush1.msra.mxu0 0.0
        %1055 = vmatprep.subr.mxu0 0.0
        %1056 = vmatpush1.msra.mxu0 0.0
        %1057 = vmatprep.subr.mxu0 0.0
        %1058 = vmatpush1.msra.mxu0 0.0
        %1059 = vmatprep.subr.mxu0 0.0
        %1060 = vmatpush1.msra.mxu0 0.0
        %1061 = vmatprep.subr.mxu0 0.0
        %1062 = vmatpush1.msra.mxu0 0.0
        %1063 = vmatprep.subr.mxu0 0.0
        %1064 = vmatpush1.msra.mxu0 0.0
        %1065 = vmatprep.subr.mxu0 0.0
        %1066 = vmatpush1.msra.mxu0 0.0
        %1067 = vmatprep.subr.mxu0 0.0
        %1068 = vmatpush1.msra.mxu0 0.0
        %1069 = vmatprep.subr.mxu0 0.0
        %1070 = vmatpush1.msra.mxu0 0.0
        %1071 = vmatprep.subr.mxu0 0.0
        %1072 = vmatpush1.msra.mxu0 0.0
        %1073 = vmatprep.subr.mxu0 0.0
        %1074 = vmatpush1.msra.mxu0 0.0
        %1075 = vmatprep.subr.mxu0 0.0
        %1076 = vmatpush1.msra.mxu0 0.0
        %1077 = vmatprep.subr.mxu0 0.0
        %1078 = vmatpush1.msra.mxu0 0.0
        %1079 = vmatprep.subr.mxu0 0.0
        %1080 = vmatpush1.msra.mxu0 0.0
        %1081 = vmatprep.subr.mxu0 0.0
        %1082 = vmatpush1.msra.mxu0 0.0
        %1083 = vmatprep.subr.mxu0 0.0
        %1084 = vmatpush1.msra.mxu0 0.0
        %1085 = vmatprep.subr.mxu0 0.0
        %1086 = vmatpush1.msra.mxu0 0.0
        %1087 = vmatprep.subr.mxu0 0.0
        %1088 = vmatpush1.msra.mxu0 0.0
        %1089 = vmatprep.mubr.f32.mxu0 0.0
        %1090 = vmatmul.mubr.f32.gmra.mrb[0].mxu0 %v1002
        %v1091 = vpop.f32.mrb[0].mxu0
        %v1092 = vadd.f32 %v998, %v1091
        %v1093 = vpop.f32.mrb[0].mxu0
        %1094 = vmatprep.mubr.f32.mxu0 0.0
        %1095 = vmatmul.mubr.f32.gmra.mrb[0].mxu0 %v1005
        %v1096 = vpop.f32.mrb[0].mxu0
        %v1097 = vadd.f32 %v998, %v1096
        %v1098 = vpop.f32.mrb[0].mxu0
        %1099 = vmatprep.mubr.f32.mxu0 0.0
        %1100 = vmatmul.mubr.f32.gmra.mrb[0].mxu0 %v1008
        %v1101 = vpop.f32.mrb[0].mxu0
        %v1102 = vadd.f32 %v998, %v1101
        %v1103 = vpop.f32.mrb[0].mxu0
        %1104 = vmatprep.mubr.f32.mxu0 0.0
        %1105 = vmatmul.mubr.f32.gmra.mrb[0].mxu0 %v1011
        %v1106 = vpop.f32.mrb[0].mxu0
        %v1107 = vadd.f32 %v998, %v1106
        %v1108 = vpop.f32.mrb[0].mxu0
        %1109 = vmatprep.mubr.f32.mxu0 0.0
        %1110 = vmatmul.mubr.f32.gmra.mrb[0].mxu0 %v1014
        %v1111 = vpop.f32.mrb[0].mxu0
        %v1112 = vadd.f32 %v998, %v1111
        %v1113 = vpop.f32.mrb[0].mxu0
        %1114 = vmatprep.mubr.f32.mxu0 0.0
        %1115 = vmatmul.mubr.f32.gmra.mrb[0].mxu0 %v1017
        %v1116 = vpop.f32.mrb[0].mxu0
        %v1117 = vadd.f32 %v998, %v1116
        %v1118 = vpop.f32.mrb[0].mxu0
        %1119 = vmatprep.mubr.f32.mxu0 0.0
        %1120 = vmatmul.mubr.f32.gmra.mrb[0].mxu0 %v1020
        %v1121 = vpop.f32.mrb[0].mxu0
        %v1122 = vadd.f32 %v998, %v1121
        %v1123 = vpop.f32.mrb[0].mxu0
        %1124 = vmatprep.mubr.f32.mxu0 0.0
        %1125 = vmatmul.mubr.f32.gmra.mrb[0].mxu0 %v1023
        %v1126 = vpop.f32.mrb[0].mxu0
        %v1127 = vadd.f32 %v998, %v1126
        %v1128 = vpop.f32.mrb[0].mxu0
        %1129 = vdwg.mxu0
        %v1130 = vmax.f32 %v1092, 0.0
        %v1131 = vmax.f32 %v1097, 0.0
        %v1132 = vmax.f32 %v1102, 0.0
        %v1133 = vmax.f32 %v1107, 0.0
        %v1134 = vmax.f32 %v1112, 0.0
        %v1135 = vmax.f32 %v1117, 0.0
        %v1136 = vmax.f32 %v1122, 0.0
        %v1137 = vmax.f32 %v1127, 0.0
        %v1138 = vand.u32 2147483647, %v1092
        %v1139 = vand.u32 2147483647, %v1097
        %v1140 = vand.u32 2147483647, %v1102
        %v1141 = vand.u32 2147483647, %v1107
        %v1142 = vand.u32 2147483647, %v1112
        %v1143 = vand.u32 2147483647, %v1117
        %v1144 = vand.u32 2147483647, %v1122
        %v1145 = vand.u32 2147483647, %v1127
        %v1146 = vsub.f32 0.0, %v1138
        %v1147 = vsub.f32 0.0, %v1139
        %v1148 = vsub.f32 0.0, %v1140
        %v1149 = vsub.f32 0.0, %v1141
        %v1150 = vsub.f32 0.0, %v1142
        %v1151 = vsub.f32 0.0, %v1143
        %v1152 = vsub.f32 0.0, %v1144
        %v1153 = vsub.f32 0.0, %v1145
        %v1154 = vmul.f32 %v1146, 1.442695
        %v1155 = vpow.pop %v1154
        %v1156 = vmul.f32 %v1147, 1.442695
        %v1157 = vpow.pop %v1156
        %v1158 = vmul.f32 %v1148, 1.442695
        %v1159 = vpow.pop %v1158
        %v1160 = vmul.f32 %v1149, 1.442695
        %v1161 = vpow.pop %v1160
        %v1162 = vmul.f32 %v1150, 1.442695
        %v1163 = vpow.pop %v1162
        %v1164 = vmul.f32 %v1151, 1.442695
        %v1165 = vpow.pop %v1164
        %v1166 = vmul.f32 %v1152, 1.442695
        %v1167 = vpow.pop %v1166
        %v1168 = vmul.f32 %v1153, 1.442695
        %v1169 = vpow.pop %v1168
        %v1170 = vadd.f32 %v1155, 1.0
        %v1171 = vlog2.pop %v1170
        %v1172 = vmul.f32 %v1171, 0.6931472
        %v1173 = vmul.f32 -0.5, %v1155
        %v1174 = vadd.f32 %v1173, 1.0
        %v1175 = vmul.f32 %v1174, %v1155
        %v1176 = vand.u32 2147483647, %v1155
        %vm1177 = vcmp.lt.f32.partialorder %v1176, 0.0004427343
        %v1178 = vsel %vm1177, %v1175, %v1172
        %v1179 = vadd.f32 %v1157, 1.0
        %v1180 = vlog2.pop %v1179
        %v1181 = vmul.f32 %v1180, 0.6931472
        %v1182 = vmul.f32 -0.5, %v1157
        %v1183 = vadd.f32 %v1182, 1.0
        %v1184 = vmul.f32 %v1183, %v1157
        %v1185 = vand.u32 2147483647, %v1157
        %vm1186 = vcmp.lt.f32.partialorder %v1185, 0.0004427343
        %v1187 = vsel %vm1186, %v1184, %v1181
        %v1188 = vadd.f32 %v1159, 1.0
        %v1189 = vlog2.pop %v1188
        %v1190 = vmul.f32 %v1189, 0.6931472
        %v1191 = vmul.f32 -0.5, %v1159
        %v1192 = vadd.f32 %v1191, 1.0
        %v1193 = vmul.f32 %v1192, %v1159
        %v1194 = vand.u32 2147483647, %v1159
        %vm1195 = vcmp.lt.f32.partialorder %v1194, 0.0004427343
        %v1196 = vsel %vm1195, %v1193, %v1190
        %v1197 = vadd.f32 %v1161, 1.0
        %v1198 = vlog2.pop %v1197
        %v1199 = vmul.f32 %v1198, 0.6931472
        %v1200 = vmul.f32 -0.5, %v1161
        %v1201 = vadd.f32 %v1200, 1.0
        %v1202 = vmul.f32 %v1201, %v1161
        %v1203 = vand.u32 2147483647, %v1161
        %vm1204 = vcmp.lt.f32.partialorder %v1203, 0.0004427343
        %v1205 = vsel %vm1204, %v1202, %v1199
        %v1206 = vadd.f32 %v1163, 1.0
        %v1207 = vlog2.pop %v1206
        %v1208 = vmul.f32 %v1207, 0.6931472
        %v1209 = vmul.f32 -0.5, %v1163
        %v1210 = vadd.f32 %v1209, 1.0
        %v1211 = vmul.f32 %v1210, %v1163
        %v1212 = vand.u32 2147483647, %v1163
        %vm1213 = vcmp.lt.f32.partialorder %v1212, 0.0004427343
        %v1214 = vsel %vm1213, %v1211, %v1208
        %v1215 = vadd.f32 %v1165, 1.0
        %v1216 = vlog2.pop %v1215
        %v1217 = vmul.f32 %v1216, 0.6931472
        %v1218 = vmul.f32 -0.5, %v1165
        %v1219 = vadd.f32 %v1218, 1.0
        %v1220 = vmul.f32 %v1219, %v1165
        %v1221 = vand.u32 2147483647, %v1165
        %vm1222 = vcmp.lt.f32.partialorder %v1221, 0.0004427343
        %v1223 = vsel %vm1222, %v1220, %v1217
        %v1224 = vadd.f32 %v1167, 1.0
        %v1225 = vlog2.pop %v1224
        %v1226 = vmul.f32 %v1225, 0.6931472
        %v1227 = vmul.f32 -0.5, %v1167
        %v1228 = vadd.f32 %v1227, 1.0
        %v1229 = vmul.f32 %v1228, %v1167
        %v1230 = vand.u32 2147483647, %v1167
        %vm1231 = vcmp.lt.f32.partialorder %v1230, 0.0004427343
        %v1232 = vsel %vm1231, %v1229, %v1226
        %v1233 = vadd.f32 %v1169, 1.0
        %v1234 = vlog2.pop %v1233
        %v1235 = vmul.f32 %v1234, 0.6931472
        %v1236 = vmul.f32 -0.5, %v1169
        %v1237 = vadd.f32 %v1236, 1.0
        %v1238 = vmul.f32 %v1237, %v1169
        %v1239 = vand.u32 2147483647, %v1169
        %vm1240 = vcmp.lt.f32.partialorder %v1239, 0.0004427343
        %v1241 = vsel %vm1240, %v1238, %v1235
        %v1242 = vadd.f32 %v1130, %v1178
        %v1243 = vadd.f32 %v1131, %v1187
        %v1244 = vadd.f32 %v1132, %v1196
        %v1245 = vadd.f32 %v1133, %v1205
        %v1246 = vadd.f32 %v1134, %v1214
        %v1247 = vadd.f32 %v1135, %v1223
        %v1248 = vadd.f32 %v1136, %v1232
        %v1249 = vadd.f32 %v1137, %v1241
        %v1251 = vlaneseq
        %v1252 = vshrl.u32 %v1251, 7
        %v1253 = vsub.s32 0, %v1252
        %v1254 = vrot.slane %v408, %v1253
        %v1257 = vsel %vm1000, %v1242, 0
        %v1260 = vsel %vm1000, %v1243, 0
        %v1263 = vsel %vm1000, %v1244, 0
        %v1266 = vsel %vm1000, %v1245, 0
        %v1269 = vsel %vm1000, %v1246, 0
        %v1272 = vsel %vm1000, %v1247, 0
        %v1275 = vsel %vm1000, %v1248, 0
        %v1278 = vsel %vm1000, %v1249, 0
        %1280 = vmatprep.subr.mxu0 0.0
        %1281 = vmatpush1.msra.mxu0 %v404
        %1282 = vmatprep.subr.mxu0 0.0
        %1283 = vmatpush1.msra.mxu0 %v405
        %1284 = vmatprep.subr.mxu0 0.0
        %1285 = vmatpush1.msra.mxu0 %v406
        %1286 = vmatprep.subr.mxu0 0.0
        %1287 = vmatpush1.msra.mxu0 %v407
        %1288 = vmatprep.subr.mxu0 0.0
        %1289 = vmatpush1.msra.mxu0 0.0
        %1290 = vmatprep.subr.mxu0 0.0
        %1291 = vmatpush1.msra.mxu0 0.0
        %1292 = vmatprep.subr.mxu0 0.0
        %1293 = vmatpush1.msra.mxu0 0.0
        %1294 = vmatprep.subr.mxu0 0.0
        %1295 = vmatpush1.msra.mxu0 0.0
        %1296 = vmatprep.subr.mxu0 0.0
        %1297 = vmatpush1.msra.mxu0 0.0
        %1298 = vmatprep.subr.mxu0 0.0
        %1299 = vmatpush1.msra.mxu0 0.0
        %1300 = vmatprep.subr.mxu0 0.0
        %1301 = vmatpush1.msra.mxu0 0.0
        %1302 = vmatprep.subr.mxu0 0.0
        %1303 = vmatpush1.msra.mxu0 0.0
        %1304 = vmatprep.subr.mxu0 0.0
        %1305 = vmatpush1.msra.mxu0 0.0
        %1306 = vmatprep.subr.mxu0 0.0
        %1307 = vmatpush1.msra.mxu0 0.0
        %1308 = vmatprep.subr.mxu0 0.0
        %1309 = vmatpush1.msra.mxu0 0.0
        %1310 = vmatprep.subr.mxu0 0.0
        %1311 = vmatpush1.msra.mxu0 0.0
        %1312 = vmatprep.subr.mxu0 0.0
        %1313 = vmatpush1.msra.mxu0 0.0
        %1314 = vmatprep.subr.mxu0 0.0
        %1315 = vmatpush1.msra.mxu0 0.0
        %1316 = vmatprep.subr.mxu0 0.0
        %1317 = vmatpush1.msra.mxu0 0.0
        %1318 = vmatprep.subr.mxu0 0.0
        %1319 = vmatpush1.msra.mxu0 0.0
        %1320 = vmatprep.subr.mxu0 0.0
        %1321 = vmatpush1.msra.mxu0 0.0
        %1322 = vmatprep.subr.mxu0 0.0
        %1323 = vmatpush1.msra.mxu0 0.0
        %1324 = vmatprep.subr.mxu0 0.0
        %1325 = vmatpush1.msra.mxu0 0.0
        %1326 = vmatprep.subr.mxu0 0.0
        %1327 = vmatpush1.msra.mxu0 0.0
        %1328 = vmatprep.subr.mxu0 0.0
        %1329 = vmatpush1.msra.mxu0 0.0
        %1330 = vmatprep.subr.mxu0 0.0
        %1331 = vmatpush1.msra.mxu0 0.0
        %1332 = vmatprep.subr.mxu0 0.0
        %1333 = vmatpush1.msra.mxu0 0.0
        %1334 = vmatprep.subr.mxu0 0.0
        %1335 = vmatpush1.msra.mxu0 0.0
        %1336 = vmatprep.subr.mxu0 0.0
        %1337 = vmatpush1.msra.mxu0 0.0
        %1338 = vmatprep.subr.mxu0 0.0
        %1339 = vmatpush1.msra.mxu0 0.0
        %1340 = vmatprep.subr.mxu0 0.0
        %1341 = vmatpush1.msra.mxu0 0.0
        %1342 = vmatprep.subr.mxu0 0.0
        %1343 = vmatpush1.msra.mxu0 0.0
        %1344 = vmatprep.mubr.f32.mxu0 0.0
        %1345 = vmatmul.mubr.f32.gmra.mrb[0].mxu0 %v1257
        %v1346 = vpop.f32.mrb[0].mxu0
        %v1347 = vadd.f32 %v1254, %v1346
        %v1348 = vpop.f32.mrb[0].mxu0
        %1349 = vmatprep.mubr.f32.mxu0 0.0
        %1350 = vmatmul.mubr.f32.gmra.mrb[0].mxu0 %v1260
        %v1351 = vpop.f32.mrb[0].mxu0
        %v1352 = vadd.f32 %v1254, %v1351
        %v1353 = vpop.f32.mrb[0].mxu0
        %1354 = vmatprep.mubr.f32.mxu0 0.0
        %1355 = vmatmul.mubr.f32.gmra.mrb[0].mxu0 %v1263
        %v1356 = vpop.f32.mrb[0].mxu0
        %v1357 = vadd.f32 %v1254, %v1356
        %v1358 = vpop.f32.mrb[0].mxu0
        %1359 = vmatprep.mubr.f32.mxu0 0.0
        %1360 = vmatmul.mubr.f32.gmra.mrb[0].mxu0 %v1266
        %v1361 = vpop.f32.mrb[0].mxu0
        %v1362 = vadd.f32 %v1254, %v1361
        %v1363 = vpop.f32.mrb[0].mxu0
        %1364 = vmatprep.mubr.f32.mxu0 0.0
        %1365 = vmatmul.mubr.f32.gmra.mrb[0].mxu0 %v1269
        %v1366 = vpop.f32.mrb[0].mxu0
        %v1367 = vadd.f32 %v1254, %v1366
        %v1368 = vpop.f32.mrb[0].mxu0
        %1369 = vmatprep.mubr.f32.mxu0 0.0
        %1370 = vmatmul.mubr.f32.gmra.mrb[0].mxu0 %v1272
        %v1371 = vpop.f32.mrb[0].mxu0
        %v1372 = vadd.f32 %v1254, %v1371
        %v1373 = vpop.f32.mrb[0].mxu0
        %1374 = vmatprep.mubr.f32.mxu0 0.0
        %1375 = vmatmul.mubr.f32.gmra.mrb[0].mxu0 %v1275
        %v1376 = vpop.f32.mrb[0].mxu0
        %v1377 = vadd.f32 %v1254, %v1376
        %v1378 = vpop.f32.mrb[0].mxu0
        %1379 = vmatprep.mubr.f32.mxu0 0.0
        %1380 = vmatmul.mubr.f32.gmra.mrb[0].mxu0 %v1278
        %v1381 = vpop.f32.mrb[0].mxu0
        %v1382 = vadd.f32 %v1254, %v1381
        %v1383 = vpop.f32.mrb[0].mxu0
        %1384 = vdwg.mxu0
        %v1385 = vmax.f32 %v1347, 0.0
        %v1386 = vmax.f32 %v1352, 0.0
        %v1387 = vmax.f32 %v1357, 0.0
        %v1388 = vmax.f32 %v1362, 0.0
        %v1389 = vmax.f32 %v1367, 0.0
        %v1390 = vmax.f32 %v1372, 0.0
        %v1391 = vmax.f32 %v1377, 0.0
        %v1392 = vmax.f32 %v1382, 0.0
        %v1393 = vand.u32 2147483647, %v1347
        %v1394 = vand.u32 2147483647, %v1352
        %v1395 = vand.u32 2147483647, %v1357
        %v1396 = vand.u32 2147483647, %v1362
        %v1397 = vand.u32 2147483647, %v1367
        %v1398 = vand.u32 2147483647, %v1372
        %v1399 = vand.u32 2147483647, %v1377
        %v1400 = vand.u32 2147483647, %v1382
        %v1401 = vsub.f32 0.0, %v1393
        %v1402 = vsub.f32 0.0, %v1394
        %v1403 = vsub.f32 0.0, %v1395
        %v1404 = vsub.f32 0.0, %v1396
        %v1405 = vsub.f32 0.0, %v1397
        %v1406 = vsub.f32 0.0, %v1398
        %v1407 = vsub.f32 0.0, %v1399
        %v1408 = vsub.f32 0.0, %v1400
        %v1409 = vmul.f32 %v1401, 1.442695
        %v1410 = vpow.pop %v1409
        %v1411 = vmul.f32 %v1402, 1.442695
        %v1412 = vpow.pop %v1411
        %v1413 = vmul.f32 %v1403, 1.442695
        %v1414 = vpow.pop %v1413
        %v1415 = vmul.f32 %v1404, 1.442695
        %v1416 = vpow.pop %v1415
        %v1417 = vmul.f32 %v1405, 1.442695
        %v1418 = vpow.pop %v1417
        %v1419 = vmul.f32 %v1406, 1.442695
        %v1420 = vpow.pop %v1419
        %v1421 = vmul.f32 %v1407, 1.442695
        %v1422 = vpow.pop %v1421
        %v1423 = vmul.f32 %v1408, 1.442695
        %v1424 = vpow.pop %v1423
        %v1425 = vadd.f32 %v1410, 1.0
        %v1426 = vlog2.pop %v1425
        %v1427 = vmul.f32 %v1426, 0.6931472
        %v1428 = vmul.f32 -0.5, %v1410
        %v1429 = vadd.f32 %v1428, 1.0
        %v1430 = vmul.f32 %v1429, %v1410
        %v1431 = vand.u32 2147483647, %v1410
        %vm1432 = vcmp.lt.f32.partialorder %v1431, 0.0004427343
        %v1433 = vsel %vm1432, %v1430, %v1427
        %v1434 = vadd.f32 %v1412, 1.0
        %v1435 = vlog2.pop %v1434
        %v1436 = vmul.f32 %v1435, 0.6931472
        %v1437 = vmul.f32 -0.5, %v1412
        %v1438 = vadd.f32 %v1437, 1.0
        %v1439 = vmul.f32 %v1438, %v1412
        %v1440 = vand.u32 2147483647, %v1412
        %vm1441 = vcmp.lt.f32.partialorder %v1440, 0.0004427343
        %v1442 = vsel %vm1441, %v1439, %v1436
        %v1443 = vadd.f32 %v1414, 1.0
        %v1444 = vlog2.pop %v1443
        %v1445 = vmul.f32 %v1444, 0.6931472
        %v1446 = vmul.f32 -0.5, %v1414
        %v1447 = vadd.f32 %v1446, 1.0
        %v1448 = vmul.f32 %v1447, %v1414
        %v1449 = vand.u32 2147483647, %v1414
        %vm1450 = vcmp.lt.f32.partialorder %v1449, 0.0004427343
        %v1451 = vsel %vm1450, %v1448, %v1445
        %v1452 = vadd.f32 %v1416, 1.0
        %v1453 = vlog2.pop %v1452
        %v1454 = vmul.f32 %v1453, 0.6931472
        %v1455 = vmul.f32 -0.5, %v1416
        %v1456 = vadd.f32 %v1455, 1.0
        %v1457 = vmul.f32 %v1456, %v1416
        %v1458 = vand.u32 2147483647, %v1416
        %vm1459 = vcmp.lt.f32.partialorder %v1458, 0.0004427343
        %v1460 = vsel %vm1459, %v1457, %v1454
        %v1461 = vadd.f32 %v1418, 1.0
        %v1462 = vlog2.pop %v1461
        %v1463 = vmul.f32 %v1462, 0.6931472
        %v1464 = vmul.f32 -0.5, %v1418
        %v1465 = vadd.f32 %v1464, 1.0
        %v1466 = vmul.f32 %v1465, %v1418
        %v1467 = vand.u32 2147483647, %v1418
        %vm1468 = vcmp.lt.f32.partialorder %v1467, 0.0004427343
        %v1469 = vsel %vm1468, %v1466, %v1463
        %v1470 = vadd.f32 %v1420, 1.0
        %v1471 = vlog2.pop %v1470
        %v1472 = vmul.f32 %v1471, 0.6931472
        %v1473 = vmul.f32 -0.5, %v1420
        %v1474 = vadd.f32 %v1473, 1.0
        %v1475 = vmul.f32 %v1474, %v1420
        %v1476 = vand.u32 2147483647, %v1420
        %vm1477 = vcmp.lt.f32.partialorder %v1476, 0.0004427343
        %v1478 = vsel %vm1477, %v1475, %v1472
        %v1479 = vadd.f32 %v1422, 1.0
        %v1480 = vlog2.pop %v1479
        %v1481 = vmul.f32 %v1480, 0.6931472
        %v1482 = vmul.f32 -0.5, %v1422
        %v1483 = vadd.f32 %v1482, 1.0
        %v1484 = vmul.f32 %v1483, %v1422
        %v1485 = vand.u32 2147483647, %v1422
        %vm1486 = vcmp.lt.f32.partialorder %v1485, 0.0004427343
        %v1487 = vsel %vm1486, %v1484, %v1481
        %v1488 = vadd.f32 %v1424, 1.0
        %v1489 = vlog2.pop %v1488
        %v1490 = vmul.f32 %v1489, 0.6931472
        %v1491 = vmul.f32 -0.5, %v1424
        %v1492 = vadd.f32 %v1491, 1.0
        %v1493 = vmul.f32 %v1492, %v1424
        %v1494 = vand.u32 2147483647, %v1424
        %vm1495 = vcmp.lt.f32.partialorder %v1494, 0.0004427343
        %v1496 = vsel %vm1495, %v1493, %v1490
        %v1497 = vadd.f32 %v1385, %v1433
        %v1498 = vadd.f32 %v1386, %v1442
        %v1499 = vadd.f32 %v1387, %v1451
        %v1500 = vadd.f32 %v1388, %v1460
        %v1501 = vadd.f32 %v1389, %v1469
        %v1502 = vadd.f32 %v1390, %v1478
        %v1503 = vadd.f32 %v1391, %v1487
        %v1504 = vadd.f32 %v1392, %v1496
        %v1505 = vsub.f32 %v1497, 0.6931472
        %v1506 = vsub.f32 %v1498, 0.6931472
        %v1507 = vsub.f32 %v1499, 0.6931472
        %v1508 = vsub.f32 %v1500, 0.6931472
        %v1509 = vsub.f32 %v1501, 0.6931472
        %v1510 = vsub.f32 %v1502, 0.6931472
        %v1511 = vsub.f32 %v1503, 0.6931472
        %v1512 = vsub.f32 %v1504, 0.6931472
        %v1513 = vadd.f32 %v391, %v1505
        %v1514 = vadd.f32 %v392, %v1506
        %v1515 = vadd.f32 %v393, %v1507
        %v1516 = vadd.f32 %v394, %v1508
        %v1517 = vadd.f32 %v395, %v1509
        %v1518 = vadd.f32 %v396, %v1510
        %v1519 = vadd.f32 %v397, %v1511
        %v1520 = vadd.f32 %v398, %v1512
        %v1521 = vmax.f32 %v1513, 0.0
        %v1522 = vmax.f32 %v1514, 0.0
        %v1523 = vmax.f32 %v1515, 0.0
        %v1524 = vmax.f32 %v1516, 0.0
        %v1525 = vmax.f32 %v1517, 0.0
        %v1526 = vmax.f32 %v1518, 0.0
        %v1527 = vmax.f32 %v1519, 0.0
        %v1528 = vmax.f32 %v1520, 0.0
        %v1529 = vand.u32 2147483647, %v1513
        %v1530 = vand.u32 2147483647, %v1514
        %v1531 = vand.u32 2147483647, %v1515
        %v1532 = vand.u32 2147483647, %v1516
        %v1533 = vand.u32 2147483647, %v1517
        %v1534 = vand.u32 2147483647, %v1518
        %v1535 = vand.u32 2147483647, %v1519
        %v1536 = vand.u32 2147483647, %v1520
        %v1537 = vsub.f32 0.0, %v1529
        %v1538 = vsub.f32 0.0, %v1530
        %v1539 = vsub.f32 0.0, %v1531
        %v1540 = vsub.f32 0.0, %v1532
        %v1541 = vsub.f32 0.0, %v1533
        %v1542 = vsub.f32 0.0, %v1534
        %v1543 = vsub.f32 0.0, %v1535
        %v1544 = vsub.f32 0.0, %v1536
        %v1545 = vmul.f32 %v1537, 1.442695
        %v1546 = vpow.pop %v1545
        %v1547 = vmul.f32 %v1538, 1.442695
        %v1548 = vpow.pop %v1547
        %v1549 = vmul.f32 %v1539, 1.442695
        %v1550 = vpow.pop %v1549
        %v1551 = vmul.f32 %v1540, 1.442695
        %v1552 = vpow.pop %v1551
        %v1553 = vmul.f32 %v1541, 1.442695
        %v1554 = vpow.pop %v1553
        %v1555 = vmul.f32 %v1542, 1.442695
        %v1556 = vpow.pop %v1555
        %v1557 = vmul.f32 %v1543, 1.442695
        %v1558 = vpow.pop %v1557
        %v1559 = vmul.f32 %v1544, 1.442695
        %v1560 = vpow.pop %v1559
        %v1561 = vadd.f32 %v1546, 1.0
        %v1562 = vlog2.pop %v1561
        %v1563 = vmul.f32 %v1562, 0.6931472
        %v1564 = vmul.f32 -0.5, %v1546
        %v1565 = vadd.f32 %v1564, 1.0
        %v1566 = vmul.f32 %v1565, %v1546
        %v1567 = vand.u32 2147483647, %v1546
        %vm1568 = vcmp.lt.f32.partialorder %v1567, 0.0004427343
        %v1569 = vsel %vm1568, %v1566, %v1563
        %v1570 = vadd.f32 %v1548, 1.0
        %v1571 = vlog2.pop %v1570
        %v1572 = vmul.f32 %v1571, 0.6931472
        %v1573 = vmul.f32 -0.5, %v1548
        %v1574 = vadd.f32 %v1573, 1.0
        %v1575 = vmul.f32 %v1574, %v1548
        %v1576 = vand.u32 2147483647, %v1548
        %vm1577 = vcmp.lt.f32.partialorder %v1576, 0.0004427343
        %v1578 = vsel %vm1577, %v1575, %v1572
        %v1579 = vadd.f32 %v1550, 1.0
        %v1580 = vlog2.pop %v1579
        %v1581 = vmul.f32 %v1580, 0.6931472
        %v1582 = vmul.f32 -0.5, %v1550
        %v1583 = vadd.f32 %v1582, 1.0
        %v1584 = vmul.f32 %v1583, %v1550
        %v1585 = vand.u32 2147483647, %v1550
        %vm1586 = vcmp.lt.f32.partialorder %v1585, 0.0004427343
        %v1587 = vsel %vm1586, %v1584, %v1581
        %v1588 = vadd.f32 %v1552, 1.0
        %v1589 = vlog2.pop %v1588
        %v1590 = vmul.f32 %v1589, 0.6931472
        %v1591 = vmul.f32 -0.5, %v1552
        %v1592 = vadd.f32 %v1591, 1.0
        %v1593 = vmul.f32 %v1592, %v1552
        %v1594 = vand.u32 2147483647, %v1552
        %vm1595 = vcmp.lt.f32.partialorder %v1594, 0.0004427343
        %v1596 = vsel %vm1595, %v1593, %v1590
        %v1597 = vadd.f32 %v1554, 1.0
        %v1598 = vlog2.pop %v1597
        %v1599 = vmul.f32 %v1598, 0.6931472
        %v1600 = vmul.f32 -0.5, %v1554
        %v1601 = vadd.f32 %v1600, 1.0
        %v1602 = vmul.f32 %v1601, %v1554
        %v1603 = vand.u32 2147483647, %v1554
        %vm1604 = vcmp.lt.f32.partialorder %v1603, 0.0004427343
        %v1605 = vsel %vm1604, %v1602, %v1599
        %v1606 = vadd.f32 %v1556, 1.0
        %v1607 = vlog2.pop %v1606
        %v1608 = vmul.f32 %v1607, 0.6931472
        %v1609 = vmul.f32 -0.5, %v1556
        %v1610 = vadd.f32 %v1609, 1.0
        %v1611 = vmul.f32 %v1610, %v1556
        %v1612 = vand.u32 2147483647, %v1556
        %vm1613 = vcmp.lt.f32.partialorder %v1612, 0.0004427343
        %v1614 = vsel %vm1613, %v1611, %v1608
        %v1615 = vadd.f32 %v1558, 1.0
        %v1616 = vlog2.pop %v1615
        %v1617 = vmul.f32 %v1616, 0.6931472
        %v1618 = vmul.f32 -0.5, %v1558
        %v1619 = vadd.f32 %v1618, 1.0
        %v1620 = vmul.f32 %v1619, %v1558
        %v1621 = vand.u32 2147483647, %v1558
        %vm1622 = vcmp.lt.f32.partialorder %v1621, 0.0004427343
        %v1623 = vsel %vm1622, %v1620, %v1617
        %v1624 = vadd.f32 %v1560, 1.0
        %v1625 = vlog2.pop %v1624
        %v1626 = vmul.f32 %v1625, 0.6931472
        %v1627 = vmul.f32 -0.5, %v1560
        %v1628 = vadd.f32 %v1627, 1.0
        %v1629 = vmul.f32 %v1628, %v1560
        %v1630 = vand.u32 2147483647, %v1560
        %vm1631 = vcmp.lt.f32.partialorder %v1630, 0.0004427343
        %v1632 = vsel %vm1631, %v1629, %v1626
        %v1633 = vadd.f32 %v1521, %v1569
        %v1634 = vadd.f32 %v1522, %v1578
        %v1635 = vadd.f32 %v1523, %v1587
        %v1636 = vadd.f32 %v1524, %v1596
        %v1637 = vadd.f32 %v1525, %v1605
        %v1638 = vadd.f32 %v1526, %v1614
        %v1639 = vadd.f32 %v1527, %v1623
        %v1640 = vadd.f32 %v1528, %v1632
        %v1641 = vsub.f32 %v1633, 0.6931472
        %v1642 = vsub.f32 %v1634, 0.6931472
        %v1643 = vsub.f32 %v1635, 0.6931472
        %v1644 = vsub.f32 %v1636, 0.6931472
        %v1645 = vsub.f32 %v1637, 0.6931472
        %v1646 = vsub.f32 %v1638, 0.6931472
        %v1647 = vsub.f32 %v1639, 0.6931472
        %v1648 = vsub.f32 %v1640, 0.6931472
        %v1649 = vld [vmem:[%s6] sm:$0xff]
        %v1650 = vld [vmem:[%s6 + $0x8] sm:$0xff]
        %v1651 = vld [vmem:[%s6 + $0x10] sm:$0xff]
        %v1652 = vld [vmem:[%s6 + $0x18] sm:$0xff]
        %v1653 = vld [vmem:[%s7] sm:$0x1]
        %v1654 = vld [vmem:[%s8] sm:$0xff]
        %v1655 = vld [vmem:[%s8 + $0x8] sm:$0xff]
        %v1656 = vld [vmem:[%s8 + $0x10] sm:$0xff]
        %v1657 = vld [vmem:[%s8 + $0x18] sm:$0xff]
        %v1658 = vld [vmem:[%s9] sm:$0x1]
        %1659 = vmatprep.subr.mxu0 0.0
        %1660 = vmatpush1.msra.mxu0 %v1641
        %1661 = vmatprep.subr.mxu0 0.0
        %1662 = vmatpush1.msra.mxu0 0.0
        %1663 = vmatprep.subr.mxu0 0.0
        %1664 = vmatpush1.msra.mxu0 0.0
        %1665 = vmatprep.subr.mxu0 0.0
        %1666 = vmatpush1.msra.mxu0 0.0
        %1667 = vmatprep.subr.mxu0 0.0
        %1668 = vmatpush1.msra.mxu0 0.0
        %1669 = vmatprep.subr.mxu0 0.0
        %1670 = vmatpush1.msra.mxu0 0.0
        %1671 = vmatprep.subr.mxu0 0.0
        %1672 = vmatpush1.msra.mxu0 0.0
        %1673 = vmatprep.subr.mxu0 0.0
        %1674 = vmatpush1.msra.mxu0 0.0
        %1675 = vmatprep.subr.mxu0 0.0
        %1676 = vmatpush1.msra.mxu0 0.0
        %1677 = vmatprep.subr.mxu0 0.0
        %1678 = vmatpush1.msra.mxu0 0.0
        %1679 = vmatprep.subr.mxu0 0.0
        %1680 = vmatpush1.msra.mxu0 0.0
        %1681 = vmatprep.subr.mxu0 0.0
        %1682 = vmatpush1.msra.mxu0 0.0
        %1683 = vmatprep.subr.mxu0 0.0
        %1684 = vmatpush1.msra.mxu0 0.0
        %1685 = vmatprep.subr.mxu0 0.0
        %1686 = vmatpush1.msra.mxu0 0.0
        %1687 = vmatprep.subr.mxu0 0.0
        %1688 = vmatpush1.msra.mxu0 0.0
        %1689 = vmatprep.subr.mxu0 0.0
        %1690 = vmatpush1.msra.mxu0 0.0
        %1691 = vmatprep.subr.mxu0 0.0
        %1692 = vmatpush1.msra.mxu0 0.0
        %1693 = vmatprep.subr.mxu0 0.0
        %1694 = vmatpush1.msra.mxu0 0.0
        %1695 = vmatprep.subr.mxu0 0.0
        %1696 = vmatpush1.msra.mxu0 0.0
        %1697 = vmatprep.subr.mxu0 0.0
        %1698 = vmatpush1.msra.mxu0 0.0
        %1699 = vmatprep.subr.mxu0 0.0
        %1700 = vmatpush1.msra.mxu0 0.0
        %1701 = vmatprep.subr.mxu0 0.0
        %1702 = vmatpush1.msra.mxu0 0.0
        %1703 = vmatprep.subr.mxu0 0.0
        %1704 = vmatpush1.msra.mxu0 0.0
        %1705 = vmatprep.subr.mxu0 0.0
        %1706 = vmatpush1.msra.mxu0 0.0
        %1707 = vmatprep.subr.mxu0 0.0
        %1708 = vmatpush1.msra.mxu0 0.0
        %1709 = vmatprep.subr.mxu0 0.0
        %1710 = vmatpush1.msra.mxu0 0.0
        %1711 = vmatprep.subr.mxu0 0.0
        %1712 = vmatpush1.msra.mxu0 0.0
        %1713 = vmatprep.subr.mxu0 0.0
        %1714 = vmatpush1.msra.mxu0 0.0
        %1715 = vmatprep.subr.mxu0 0.0
        %1716 = vmatpush1.msra.mxu0 0.0
        %1717 = vmatprep.subr.mxu0 0.0
        %1718 = vmatpush1.msra.mxu0 0.0
        %1719 = vmatprep.subr.mxu0 0.0
        %1720 = vmatpush1.msra.mxu0 0.0
        %1721 = vmatprep.subr.mxu0 0.0
        %1722 = vmatpush1.msra.mxu0 0.0
        %1723 = vmatprep.mubr.f32.mxu0 0.0
        %1724 = vmatmul.mubr.f32.gmra.mrb[0].mxu0 %v411
        %v1725 = vpop.f32.mrb[0].mxu0
        %v1726 = vadd.f32 0.0, %v1725
        %v1727 = vpop.f32.mrb[0].mxu0
        %1728 = vdwg.mxu0
        %1729 = vmatprep.subr.mxu0 0.0
        %1730 = vmatpush1.msra.mxu0 %v1642
        %1731 = vmatprep.subr.mxu0 0.0
        %1732 = vmatpush1.msra.mxu0 0.0
        %1733 = vmatprep.subr.mxu0 0.0
        %1734 = vmatpush1.msra.mxu0 0.0
        %1735 = vmatprep.subr.mxu0 0.0
        %1736 = vmatpush1.msra.mxu0 0.0
        %1737 = vmatprep.subr.mxu0 0.0
        %1738 = vmatpush1.msra.mxu0 0.0
        %1739 = vmatprep.subr.mxu0 0.0
        %1740 = vmatpush1.msra.mxu0 0.0
        %1741 = vmatprep.subr.mxu0 0.0
        %1742 = vmatpush1.msra.mxu0 0.0
        %1743 = vmatprep.subr.mxu0 0.0
        %1744 = vmatpush1.msra.mxu0 0.0
        %1745 = vmatprep.subr.mxu0 0.0
        %1746 = vmatpush1.msra.mxu0 0.0
        %1747 = vmatprep.subr.mxu0 0.0
        %1748 = vmatpush1.msra.mxu0 0.0
        %1749 = vmatprep.subr.mxu0 0.0
        %1750 = vmatpush1.msra.mxu0 0.0
        %1751 = vmatprep.subr.mxu0 0.0
        %1752 = vmatpush1.msra.mxu0 0.0
        %1753 = vmatprep.subr.mxu0 0.0
        %1754 = vmatpush1.msra.mxu0 0.0
        %1755 = vmatprep.subr.mxu0 0.0
        %1756 = vmatpush1.msra.mxu0 0.0
        %1757 = vmatprep.subr.mxu0 0.0
        %1758 = vmatpush1.msra.mxu0 0.0
        %1759 = vmatprep.subr.mxu0 0.0
        %1760 = vmatpush1.msra.mxu0 0.0
        %1761 = vmatprep.subr.mxu0 0.0
        %1762 = vmatpush1.msra.mxu0 0.0
        %1763 = vmatprep.subr.mxu0 0.0
        %1764 = vmatpush1.msra.mxu0 0.0
        %1765 = vmatprep.subr.mxu0 0.0
        %1766 = vmatpush1.msra.mxu0 0.0
        %1767 = vmatprep.subr.mxu0 0.0
        %1768 = vmatpush1.msra.mxu0 0.0
        %1769 = vmatprep.subr.mxu0 0.0
        %1770 = vmatpush1.msra.mxu0 0.0
        %1771 = vmatprep.subr.mxu0 0.0
        %1772 = vmatpush1.msra.mxu0 0.0
        %1773 = vmatprep.subr.mxu0 0.0
        %1774 = vmatpush1.msra.mxu0 0.0
        %1775 = vmatprep.subr.mxu0 0.0
        %1776 = vmatpush1.msra.mxu0 0.0
        %1777 = vmatprep.subr.mxu0 0.0
        %1778 = vmatpush1.msra.mxu0 0.0
        %1779 = vmatprep.subr.mxu0 0.0
        %1780 = vmatpush1.msra.mxu0 0.0
        %1781 = vmatprep.subr.mxu0 0.0
        %1782 = vmatpush1.msra.mxu0 0.0
        %1783 = vmatprep.subr.mxu0 0.0
        %1784 = vmatpush1.msra.mxu0 0.0
        %1785 = vmatprep.subr.mxu0 0.0
        %1786 = vmatpush1.msra.mxu0 0.0
        %1787 = vmatprep.subr.mxu0 0.0
        %1788 = vmatpush1.msra.mxu0 0.0
        %1789 = vmatprep.subr.mxu0 0.0
        %1790 = vmatpush1.msra.mxu0 0.0
        %1791 = vmatprep.subr.mxu0 0.0
        %1792 = vmatpush1.msra.mxu0 0.0
        %1793 = vmatprep.mubr.f32.mxu0 0.0
        %1794 = vmatmul.mubr.f32.gmra.mrb[0].mxu0 %v484
        %v1795 = vpop.f32.mrb[0].mxu0
        %v1796 = vadd.f32 0.0, %v1795
        %v1797 = vpop.f32.mrb[0].mxu0
        %1798 = vdwg.mxu0
        %1799 = vmatprep.subr.mxu0 0.0
        %1800 = vmatpush1.msra.mxu0 %v1643
        %1801 = vmatprep.subr.mxu0 0.0
        %1802 = vmatpush1.msra.mxu0 0.0
        %1803 = vmatprep.subr.mxu0 0.0
        %1804 = vmatpush1.msra.mxu0 0.0
        %1805 = vmatprep.subr.mxu0 0.0
        %1806 = vmatpush1.msra.mxu0 0.0
        %1807 = vmatprep.subr.mxu0 0.0
        %1808 = vmatpush1.msra.mxu0 0.0
        %1809 = vmatprep.subr.mxu0 0.0
        %1810 = vmatpush1.msra.mxu0 0.0
        %1811 = vmatprep.subr.mxu0 0.0
        %1812 = vmatpush1.msra.mxu0 0.0
        %1813 = vmatprep.subr.mxu0 0.0
        %1814 = vmatpush1.msra.mxu0 0.0
        %1815 = vmatprep.subr.mxu0 0.0
        %1816 = vmatpush1.msra.mxu0 0.0
        %1817 = vmatprep.subr.mxu0 0.0
        %1818 = vmatpush1.msra.mxu0 0.0
        %1819 = vmatprep.subr.mxu0 0.0
        %1820 = vmatpush1.msra.mxu0 0.0
        %1821 = vmatprep.subr.mxu0 0.0
        %1822 = vmatpush1.msra.mxu0 0.0
        %1823 = vmatprep.subr.mxu0 0.0
        %1824 = vmatpush1.msra.mxu0 0.0
        %1825 = vmatprep.subr.mxu0 0.0
        %1826 = vmatpush1.msra.mxu0 0.0
        %1827 = vmatprep.subr.mxu0 0.0
        %1828 = vmatpush1.msra.mxu0 0.0
        %1829 = vmatprep.subr.mxu0 0.0
        %1830 = vmatpush1.msra.mxu0 0.0
        %1831 = vmatprep.subr.mxu0 0.0
        %1832 = vmatpush1.msra.mxu0 0.0
        %1833 = vmatprep.subr.mxu0 0.0
        %1834 = vmatpush1.msra.mxu0 0.0
        %1835 = vmatprep.subr.mxu0 0.0
        %1836 = vmatpush1.msra.mxu0 0.0
        %1837 = vmatprep.subr.mxu0 0.0
        %1838 = vmatpush1.msra.mxu0 0.0
        %1839 = vmatprep.subr.mxu0 0.0
        %1840 = vmatpush1.msra.mxu0 0.0
        %1841 = vmatprep.subr.mxu0 0.0
        %1842 = vmatpush1.msra.mxu0 0.0
        %1843 = vmatprep.subr.mxu0 0.0
        %1844 = vmatpush1.msra.mxu0 0.0
        %1845 = vmatprep.subr.mxu0 0.0
        %1846 = vmatpush1.msra.mxu0 0.0
        %1847 = vmatprep.subr.mxu0 0.0
        %1848 = vmatpush1.msra.mxu0 0.0
        %1849 = vmatprep.subr.mxu0 0.0
        %1850 = vmatpush1.msra.mxu0 0.0
        %1851 = vmatprep.subr.mxu0 0.0
        %1852 = vmatpush1.msra.mxu0 0.0
        %1853 = vmatprep.subr.mxu0 0.0
        %1854 = vmatpush1.msra.mxu0 0.0
        %1855 = vmatprep.subr.mxu0 0.0
        %1856 = vmatpush1.msra.mxu0 0.0
        %1857 = vmatprep.subr.mxu0 0.0
        %1858 = vmatpush1.msra.mxu0 0.0
        %1859 = vmatprep.subr.mxu0 0.0
        %1860 = vmatpush1.msra.mxu0 0.0
        %1861 = vmatprep.subr.mxu0 0.0
        %1862 = vmatpush1.msra.mxu0 0.0
        %1863 = vmatprep.mubr.f32.mxu0 0.0
        %1864 = vmatmul.mubr.f32.gmra.mrb[0].mxu0 %v557
        %v1865 = vpop.f32.mrb[0].mxu0
        %v1866 = vadd.f32 0.0, %v1865
        %v1867 = vpop.f32.mrb[0].mxu0
        %1868 = vdwg.mxu0
        %1869 = vmatprep.subr.mxu0 0.0
        %1870 = vmatpush1.msra.mxu0 %v1644
        %1871 = vmatprep.subr.mxu0 0.0
        %1872 = vmatpush1.msra.mxu0 0.0
        %1873 = vmatprep.subr.mxu0 0.0
        %1874 = vmatpush1.msra.mxu0 0.0
        %1875 = vmatprep.subr.mxu0 0.0
        %1876 = vmatpush1.msra.mxu0 0.0
        %1877 = vmatprep.subr.mxu0 0.0
        %1878 = vmatpush1.msra.mxu0 0.0
        %1879 = vmatprep.subr.mxu0 0.0
        %1880 = vmatpush1.msra.mxu0 0.0
        %1881 = vmatprep.subr.mxu0 0.0
        %1882 = vmatpush1.msra.mxu0 0.0
        %1883 = vmatprep.subr.mxu0 0.0
        %1884 = vmatpush1.msra.mxu0 0.0
        %1885 = vmatprep.subr.mxu0 0.0
        %1886 = vmatpush1.msra.mxu0 0.0
        %1887 = vmatprep.subr.mxu0 0.0
        %1888 = vmatpush1.msra.mxu0 0.0
        %1889 = vmatprep.subr.mxu0 0.0
        %1890 = vmatpush1.msra.mxu0 0.0
        %1891 = vmatprep.subr.mxu0 0.0
        %1892 = vmatpush1.msra.mxu0 0.0
        %1893 = vmatprep.subr.mxu0 0.0
        %1894 = vmatpush1.msra.mxu0 0.0
        %1895 = vmatprep.subr.mxu0 0.0
        %1896 = vmatpush1.msra.mxu0 0.0
        %1897 = vmatprep.subr.mxu0 0.0
        %1898 = vmatpush1.msra.mxu0 0.0
        %1899 = vmatprep.subr.mxu0 0.0
        %1900 = vmatpush1.msra.mxu0 0.0
        %1901 = vmatprep.subr.mxu0 0.0
        %1902 = vmatpush1.msra.mxu0 0.0
        %1903 = vmatprep.subr.mxu0 0.0
        %1904 = vmatpush1.msra.mxu0 0.0
        %1905 = vmatprep.subr.mxu0 0.0
        %1906 = vmatpush1.msra.mxu0 0.0
        %1907 = vmatprep.subr.mxu0 0.0
        %1908 = vmatpush1.msra.mxu0 0.0
        %1909 = vmatprep.subr.mxu0 0.0
        %1910 = vmatpush1.msra.mxu0 0.0
        %1911 = vmatprep.subr.mxu0 0.0
        %1912 = vmatpush1.msra.mxu0 0.0
        %1913 = vmatprep.subr.mxu0 0.0
        %1914 = vmatpush1.msra.mxu0 0.0
        %1915 = vmatprep.subr.mxu0 0.0
        %1916 = vmatpush1.msra.mxu0 0.0
        %1917 = vmatprep.subr.mxu0 0.0
        %1918 = vmatpush1.msra.mxu0 0.0
        %1919 = vmatprep.subr.mxu0 0.0
        %1920 = vmatpush1.msra.mxu0 0.0
        %1921 = vmatprep.subr.mxu0 0.0
        %1922 = vmatpush1.msra.mxu0 0.0
        %1923 = vmatprep.subr.mxu0 0.0
        %1924 = vmatpush1.msra.mxu0 0.0
        %1925 = vmatprep.subr.mxu0 0.0
        %1926 = vmatpush1.msra.mxu0 0.0
        %1927 = vmatprep.subr.mxu0 0.0
        %1928 = vmatpush1.msra.mxu0 0.0
        %1929 = vmatprep.subr.mxu0 0.0
        %1930 = vmatpush1.msra.mxu0 0.0
        %1931 = vmatprep.subr.mxu0 0.0
        %1932 = vmatpush1.msra.mxu0 0.0
        %1933 = vmatprep.mubr.f32.mxu0 0.0
        %1934 = vmatmul.mubr.f32.gmra.mrb[0].mxu0 %v630
        %v1935 = vpop.f32.mrb[0].mxu0
        %v1936 = vadd.f32 0.0, %v1935
        %v1937 = vpop.f32.mrb[0].mxu0
        %1938 = vdwg.mxu0
        %1939 = vmatprep.subr.mxu0 0.0
        %1940 = vmatpush1.msra.mxu0 %v1645
        %1941 = vmatprep.subr.mxu0 0.0
        %1942 = vmatpush1.msra.mxu0 0.0
        %1943 = vmatprep.subr.mxu0 0.0
        %1944 = vmatpush1.msra.mxu0 0.0
        %1945 = vmatprep.subr.mxu0 0.0
        %1946 = vmatpush1.msra.mxu0 0.0
        %1947 = vmatprep.subr.mxu0 0.0
        %1948 = vmatpush1.msra.mxu0 0.0
        %1949 = vmatprep.subr.mxu0 0.0
        %1950 = vmatpush1.msra.mxu0 0.0
        %1951 = vmatprep.subr.mxu0 0.0
        %1952 = vmatpush1.msra.mxu0 0.0
        %1953 = vmatprep.subr.mxu0 0.0
        %1954 = vmatpush1.msra.mxu0 0.0
        %1955 = vmatprep.subr.mxu0 0.0
        %1956 = vmatpush1.msra.mxu0 0.0
        %1957 = vmatprep.subr.mxu0 0.0
        %1958 = vmatpush1.msra.mxu0 0.0
        %1959 = vmatprep.subr.mxu0 0.0
        %1960 = vmatpush1.msra.mxu0 0.0
        %1961 = vmatprep.subr.mxu0 0.0
        %1962 = vmatpush1.msra.mxu0 0.0
        %1963 = vmatprep.subr.mxu0 0.0
        %1964 = vmatpush1.msra.mxu0 0.0
        %1965 = vmatprep.subr.mxu0 0.0
        %1966 = vmatpush1.msra.mxu0 0.0
        %1967 = vmatprep.subr.mxu0 0.0
        %1968 = vmatpush1.msra.mxu0 0.0
        %1969 = vmatprep.subr.mxu0 0.0
        %1970 = vmatpush1.msra.mxu0 0.0
        %1971 = vmatprep.subr.mxu0 0.0
        %1972 = vmatpush1.msra.mxu0 0.0
        %1973 = vmatprep.subr.mxu0 0.0
        %1974 = vmatpush1.msra.mxu0 0.0
        %1975 = vmatprep.subr.mxu0 0.0
        %1976 = vmatpush1.msra.mxu0 0.0
        %1977 = vmatprep.subr.mxu0 0.0
        %1978 = vmatpush1.msra.mxu0 0.0
        %1979 = vmatprep.subr.mxu0 0.0
        %1980 = vmatpush1.msra.mxu0 0.0
        %1981 = vmatprep.subr.mxu0 0.0
        %1982 = vmatpush1.msra.mxu0 0.0
        %1983 = vmatprep.subr.mxu0 0.0
        %1984 = vmatpush1.msra.mxu0 0.0
        %1985 = vmatprep.subr.mxu0 0.0
        %1986 = vmatpush1.msra.mxu0 0.0
        %1987 = vmatprep.subr.mxu0 0.0
        %1988 = vmatpush1.msra.mxu0 0.0
        %1989 = vmatprep.subr.mxu0 0.0
        %1990 = vmatpush1.msra.mxu0 0.0
        %1991 = vmatprep.subr.mxu0 0.0
        %1992 = vmatpush1.msra.mxu0 0.0
        %1993 = vmatprep.subr.mxu0 0.0
        %1994 = vmatpush1.msra.mxu0 0.0
        %1995 = vmatprep.subr.mxu0 0.0
        %1996 = vmatpush1.msra.mxu0 0.0
        %1997 = vmatprep.subr.mxu0 0.0
        %1998 = vmatpush1.msra.mxu0 0.0
        %1999 = vmatprep.subr.mxu0 0.0
        %2000 = vmatpush1.msra.mxu0 0.0
        %2001 = vmatprep.subr.mxu0 0.0
        %2002 = vmatpush1.msra.mxu0 0.0
        %2003 = vmatprep.mubr.f32.mxu0 0.0
        %2004 = vmatmul.mubr.f32.gmra.mrb[0].mxu0 %v703
        %v2005 = vpop.f32.mrb[0].mxu0
        %v2006 = vadd.f32 0.0, %v2005
        %v2007 = vpop.f32.mrb[0].mxu0
        %2008 = vdwg.mxu0
        %2009 = vmatprep.subr.mxu0 0.0
        %2010 = vmatpush1.msra.mxu0 %v1646
        %2011 = vmatprep.subr.mxu0 0.0
        %2012 = vmatpush1.msra.mxu0 0.0
        %2013 = vmatprep.subr.mxu0 0.0
        %2014 = vmatpush1.msra.mxu0 0.0
        %2015 = vmatprep.subr.mxu0 0.0
        %2016 = vmatpush1.msra.mxu0 0.0
        %2017 = vmatprep.subr.mxu0 0.0
        %2018 = vmatpush1.msra.mxu0 0.0
        %2019 = vmatprep.subr.mxu0 0.0
        %2020 = vmatpush1.msra.mxu0 0.0
        %2021 = vmatprep.subr.mxu0 0.0
        %2022 = vmatpush1.msra.mxu0 0.0
        %2023 = vmatprep.subr.mxu0 0.0
        %2024 = vmatpush1.msra.mxu0 0.0
        %2025 = vmatprep.subr.mxu0 0.0
        %2026 = vmatpush1.msra.mxu0 0.0
        %2027 = vmatprep.subr.mxu0 0.0
        %2028 = vmatpush1.msra.mxu0 0.0
        %2029 = vmatprep.subr.mxu0 0.0
        %2030 = vmatpush1.msra.mxu0 0.0
        %2031 = vmatprep.subr.mxu0 0.0
        %2032 = vmatpush1.msra.mxu0 0.0
        %2033 = vmatprep.subr.mxu0 0.0
        %2034 = vmatpush1.msra.mxu0 0.0
        %2035 = vmatprep.subr.mxu0 0.0
        %2036 = vmatpush1.msra.mxu0 0.0
        %2037 = vmatprep.subr.mxu0 0.0
        %2038 = vmatpush1.msra.mxu0 0.0
        %2039 = vmatprep.subr.mxu0 0.0
        %2040 = vmatpush1.msra.mxu0 0.0
        %2041 = vmatprep.subr.mxu0 0.0
        %2042 = vmatpush1.msra.mxu0 0.0
        %2043 = vmatprep.subr.mxu0 0.0
        %2044 = vmatpush1.msra.mxu0 0.0
        %2045 = vmatprep.subr.mxu0 0.0
        %2046 = vmatpush1.msra.mxu0 0.0
        %2047 = vmatprep.subr.mxu0 0.0
        %2048 = vmatpush1.msra.mxu0 0.0
        %2049 = vmatprep.subr.mxu0 0.0
        %2050 = vmatpush1.msra.mxu0 0.0
        %2051 = vmatprep.subr.mxu0 0.0
        %2052 = vmatpush1.msra.mxu0 0.0
        %2053 = vmatprep.subr.mxu0 0.0
        %2054 = vmatpush1.msra.mxu0 0.0
        %2055 = vmatprep.subr.mxu0 0.0
        %2056 = vmatpush1.msra.mxu0 0.0
        %2057 = vmatprep.subr.mxu0 0.0
        %2058 = vmatpush1.msra.mxu0 0.0
        %2059 = vmatprep.subr.mxu0 0.0
        %2060 = vmatpush1.msra.mxu0 0.0
        %2061 = vmatprep.subr.mxu0 0.0
        %2062 = vmatpush1.msra.mxu0 0.0
        %2063 = vmatprep.subr.mxu0 0.0
        %2064 = vmatpush1.msra.mxu0 0.0
        %2065 = vmatprep.subr.mxu0 0.0
        %2066 = vmatpush1.msra.mxu0 0.0
        %2067 = vmatprep.subr.mxu0 0.0
        %2068 = vmatpush1.msra.mxu0 0.0
        %2069 = vmatprep.subr.mxu0 0.0
        %2070 = vmatpush1.msra.mxu0 0.0
        %2071 = vmatprep.subr.mxu0 0.0
        %2072 = vmatpush1.msra.mxu0 0.0
        %2073 = vmatprep.mubr.f32.mxu0 0.0
        %2074 = vmatmul.mubr.f32.gmra.mrb[0].mxu0 %v776
        %v2075 = vpop.f32.mrb[0].mxu0
        %v2076 = vadd.f32 0.0, %v2075
        %v2077 = vpop.f32.mrb[0].mxu0
        %2078 = vdwg.mxu0
        %2079 = vmatprep.subr.mxu0 0.0
        %2080 = vmatpush1.msra.mxu0 %v1647
        %2081 = vmatprep.subr.mxu0 0.0
        %2082 = vmatpush1.msra.mxu0 0.0
        %2083 = vmatprep.subr.mxu0 0.0
        %2084 = vmatpush1.msra.mxu0 0.0
        %2085 = vmatprep.subr.mxu0 0.0
        %2086 = vmatpush1.msra.mxu0 0.0
        %2087 = vmatprep.subr.mxu0 0.0
        %2088 = vmatpush1.msra.mxu0 0.0
        %2089 = vmatprep.subr.mxu0 0.0
        %2090 = vmatpush1.msra.mxu0 0.0
        %2091 = vmatprep.subr.mxu0 0.0
        %2092 = vmatpush1.msra.mxu0 0.0
        %2093 = vmatprep.subr.mxu0 0.0
        %2094 = vmatpush1.msra.mxu0 0.0
        %2095 = vmatprep.subr.mxu0 0.0
        %2096 = vmatpush1.msra.mxu0 0.0
        %2097 = vmatprep.subr.mxu0 0.0
        %2098 = vmatpush1.msra.mxu0 0.0
        %2099 = vmatprep.subr.mxu0 0.0
        %2100 = vmatpush1.msra.mxu0 0.0
        %2101 = vmatprep.subr.mxu0 0.0
        %2102 = vmatpush1.msra.mxu0 0.0
        %2103 = vmatprep.subr.mxu0 0.0
        %2104 = vmatpush1.msra.mxu0 0.0
        %2105 = vmatprep.subr.mxu0 0.0
        %2106 = vmatpush1.msra.mxu0 0.0
        %2107 = vmatprep.subr.mxu0 0.0
        %2108 = vmatpush1.msra.mxu0 0.0
        %2109 = vmatprep.subr.mxu0 0.0
        %2110 = vmatpush1.msra.mxu0 0.0
        %2111 = vmatprep.subr.mxu0 0.0
        %2112 = vmatpush1.msra.mxu0 0.0
        %2113 = vmatprep.subr.mxu0 0.0
        %2114 = vmatpush1.msra.mxu0 0.0
        %2115 = vmatprep.subr.mxu0 0.0
        %2116 = vmatpush1.msra.mxu0 0.0
        %2117 = vmatprep.subr.mxu0 0.0
        %2118 = vmatpush1.msra.mxu0 0.0
        %2119 = vmatprep.subr.mxu0 0.0
        %2120 = vmatpush1.msra.mxu0 0.0
        %2121 = vmatprep.subr.mxu0 0.0
        %2122 = vmatpush1.msra.mxu0 0.0
        %2123 = vmatprep.subr.mxu0 0.0
        %2124 = vmatpush1.msra.mxu0 0.0
        %2125 = vmatprep.subr.mxu0 0.0
        %2126 = vmatpush1.msra.mxu0 0.0
        %2127 = vmatprep.subr.mxu0 0.0
        %2128 = vmatpush1.msra.mxu0 0.0
        %2129 = vmatprep.subr.mxu0 0.0
        %2130 = vmatpush1.msra.mxu0 0.0
        %2131 = vmatprep.subr.mxu0 0.0
        %2132 = vmatpush1.msra.mxu0 0.0
        %2133 = vmatprep.subr.mxu0 0.0
        %2134 = vmatpush1.msra.mxu0 0.0
        %2135 = vmatprep.subr.mxu0 0.0
        %2136 = vmatpush1.msra.mxu0 0.0
        %2137 = vmatprep.subr.mxu0 0.0
        %2138 = vmatpush1.msra.mxu0 0.0
        %2139 = vmatprep.subr.mxu0 0.0
        %2140 = vmatpush1.msra.mxu0 0.0
        %2141 = vmatprep.subr.mxu0 0.0
        %2142 = vmatpush1.msra.mxu0 0.0
        %2143 = vmatprep.mubr.f32.mxu0 0.0
        %2144 = vmatmul.mubr.f32.gmra.mrb[0].mxu0 %v849
        %v2145 = vpop.f32.mrb[0].mxu0
        %v2146 = vadd.f32 0.0, %v2145
        %v2147 = vpop.f32.mrb[0].mxu0
        %2148 = vdwg.mxu0
        %2149 = vmatprep.subr.mxu0 0.0
        %2150 = vmatpush1.msra.mxu0 %v1648
        %2151 = vmatprep.subr.mxu0 0.0
        %2152 = vmatpush1.msra.mxu0 0.0
        %2153 = vmatprep.subr.mxu0 0.0
        %2154 = vmatpush1.msra.mxu0 0.0
        %2155 = vmatprep.subr.mxu0 0.0
        %2156 = vmatpush1.msra.mxu0 0.0
        %2157 = vmatprep.subr.mxu0 0.0
        %2158 = vmatpush1.msra.mxu0 0.0
        %2159 = vmatprep.subr.mxu0 0.0
        %2160 = vmatpush1.msra.mxu0 0.0
        %2161 = vmatprep.subr.mxu0 0.0
        %2162 = vmatpush1.msra.mxu0 0.0
        %2163 = vmatprep.subr.mxu0 0.0
        %2164 = vmatpush1.msra.mxu0 0.0
        %2165 = vmatprep.subr.mxu0 0.0
        %2166 = vmatpush1.msra.mxu0 0.0
        %2167 = vmatprep.subr.mxu0 0.0
        %2168 = vmatpush1.msra.mxu0 0.0
        %2169 = vmatprep.subr.mxu0 0.0
        %2170 = vmatpush1.msra.mxu0 0.0
        %2171 = vmatprep.subr.mxu0 0.0
        %2172 = vmatpush1.msra.mxu0 0.0
        %2173 = vmatprep.subr.mxu0 0.0
        %2174 = vmatpush1.msra.mxu0 0.0
        %2175 = vmatprep.subr.mxu0 0.0
        %2176 = vmatpush1.msra.mxu0 0.0
        %2177 = vmatprep.subr.mxu0 0.0
        %2178 = vmatpush1.msra.mxu0 0.0
        %2179 = vmatprep.subr.mxu0 0.0
        %2180 = vmatpush1.msra.mxu0 0.0
        %2181 = vmatprep.subr.mxu0 0.0
        %2182 = vmatpush1.msra.mxu0 0.0
        %2183 = vmatprep.subr.mxu0 0.0
        %2184 = vmatpush1.msra.mxu0 0.0
        %2185 = vmatprep.subr.mxu0 0.0
        %2186 = vmatpush1.msra.mxu0 0.0
        %2187 = vmatprep.subr.mxu0 0.0
        %2188 = vmatpush1.msra.mxu0 0.0
        %2189 = vmatprep.subr.mxu0 0.0
        %2190 = vmatpush1.msra.mxu0 0.0
        %2191 = vmatprep.subr.mxu0 0.0
        %2192 = vmatpush1.msra.mxu0 0.0
        %2193 = vmatprep.subr.mxu0 0.0
        %2194 = vmatpush1.msra.mxu0 0.0
        %2195 = vmatprep.subr.mxu0 0.0
        %2196 = vmatpush1.msra.mxu0 0.0
        %2197 = vmatprep.subr.mxu0 0.0
        %2198 = vmatpush1.msra.mxu0 0.0
        %2199 = vmatprep.subr.mxu0 0.0
        %2200 = vmatpush1.msra.mxu0 0.0
        %2201 = vmatprep.subr.mxu0 0.0
        %2202 = vmatpush1.msra.mxu0 0.0
        %2203 = vmatprep.subr.mxu0 0.0
        %2204 = vmatpush1.msra.mxu0 0.0
        %2205 = vmatprep.subr.mxu0 0.0
        %2206 = vmatpush1.msra.mxu0 0.0
        %2207 = vmatprep.subr.mxu0 0.0
        %2208 = vmatpush1.msra.mxu0 0.0
        %2209 = vmatprep.subr.mxu0 0.0
        %2210 = vmatpush1.msra.mxu0 0.0
        %2211 = vmatprep.subr.mxu0 0.0
        %2212 = vmatpush1.msra.mxu0 0.0
        %2213 = vmatprep.mubr.f32.mxu0 0.0
        %2214 = vmatmul.mubr.f32.gmra.mrb[0].mxu0 %v922
        %v2215 = vpop.f32.mrb[0].mxu0
        %v2216 = vadd.f32 0.0, %v2215
        %v2217 = vpop.f32.mrb[0].mxu0
        %2218 = vdwg.mxu0
        %v2220 = vlaneseq
        %v2221 = vshrl.u32 %v2220, 7
        %v2222 = vsub.s32 0, %v2221
        %v2223 = vrot.slane %v1653, %v2222
        %v2226 = vsel %vm1000, %v1726, 0
        %v2229 = vsel %vm1000, %v1796, 0
        %v2232 = vsel %vm1000, %v1866, 0
        %v2235 = vsel %vm1000, %v1936, 0
        %v2238 = vsel %vm1000, %v2006, 0
        %v2241 = vsel %vm1000, %v2076, 0
        %v2244 = vsel %vm1000, %v2146, 0
        %v2247 = vsel %vm1000, %v2216, 0
        %2249 = vmatprep.subr.mxu0 0.0
        %2250 = vmatpush1.msra.mxu0 %v1649
        %2251 = vmatprep.subr.mxu0 0.0
        %2252 = vmatpush1.msra.mxu0 %v1650
        %2253 = vmatprep.subr.mxu0 0.0
        %2254 = vmatpush1.msra.mxu0 %v1651
        %2255 = vmatprep.subr.mxu0 0.0
        %2256 = vmatpush1.msra.mxu0 %v1652
        %2257 = vmatprep.subr.mxu0 0.0
        %2258 = vmatpush1.msra.mxu0 0.0
        %2259 = vmatprep.subr.mxu0 0.0
        %2260 = vmatpush1.msra.mxu0 0.0
        %2261 = vmatprep.subr.mxu0 0.0
        %2262 = vmatpush1.msra.mxu0 0.0
        %2263 = vmatprep.subr.mxu0 0.0
        %2264 = vmatpush1.msra.mxu0 0.0
        %2265 = vmatprep.subr.mxu0 0.0
        %2266 = vmatpush1.msra.mxu0 0.0
        %2267 = vmatprep.subr.mxu0 0.0
        %2268 = vmatpush1.msra.mxu0 0.0
        %2269 = vmatprep.subr.mxu0 0.0
        %2270 = vmatpush1.msra.mxu0 0.0
        %2271 = vmatprep.subr.mxu0 0.0
        %2272 = vmatpush1.msra.mxu0 0.0
        %2273 = vmatprep.subr.mxu0 0.0
        %2274 = vmatpush1.msra.mxu0 0.0
        %2275 = vmatprep.subr.mxu0 0.0
        %2276 = vmatpush1.msra.mxu0 0.0
        %2277 = vmatprep.subr.mxu0 0.0
        %2278 = vmatpush1.msra.mxu0 0.0
        %2279 = vmatprep.subr.mxu0 0.0
        %2280 = vmatpush1.msra.mxu0 0.0
        %2281 = vmatprep.subr.mxu0 0.0
        %2282 = vmatpush1.msra.mxu0 0.0
        %2283 = vmatprep.subr.mxu0 0.0
        %2284 = vmatpush1.msra.mxu0 0.0
        %2285 = vmatprep.subr.mxu0 0.0
        %2286 = vmatpush1.msra.mxu0 0.0
        %2287 = vmatprep.subr.mxu0 0.0
        %2288 = vmatpush1.msra.mxu0 0.0
        %2289 = vmatprep.subr.mxu0 0.0
        %2290 = vmatpush1.msra.mxu0 0.0
        %2291 = vmatprep.subr.mxu0 0.0
        %2292 = vmatpush1.msra.mxu0 0.0
        %2293 = vmatprep.subr.mxu0 0.0
        %2294 = vmatpush1.msra.mxu0 0.0
        %2295 = vmatprep.subr.mxu0 0.0
        %2296 = vmatpush1.msra.mxu0 0.0
        %2297 = vmatprep.subr.mxu0 0.0
        %2298 = vmatpush1.msra.mxu0 0.0
        %2299 = vmatprep.subr.mxu0 0.0
        %2300 = vmatpush1.msra.mxu0 0.0
        %2301 = vmatprep.subr.mxu0 0.0
        %2302 = vmatpush1.msra.mxu0 0.0
        %2303 = vmatprep.subr.mxu0 0.0
        %2304 = vmatpush1.msra.mxu0 0.0
        %2305 = vmatprep.subr.mxu0 0.0
        %2306 = vmatpush1.msra.mxu0 0.0
        %2307 = vmatprep.subr.mxu0 0.0
        %2308 = vmatpush1.msra.mxu0 0.0
        %2309 = vmatprep.subr.mxu0 0.0
        %2310 = vmatpush1.msra.mxu0 0.0
        %2311 = vmatprep.subr.mxu0 0.0
        %2312 = vmatpush1.msra.mxu0 0.0
        %2313 = vmatprep.mubr.f32.mxu0 0.0
        %2314 = vmatmul.mubr.f32.gmra.mrb[0].mxu0 %v2226
        %v2315 = vpop.f32.mrb[0].mxu0
        %v2316 = vadd.f32 %v2223, %v2315
        %v2317 = vpop.f32.mrb[0].mxu0
        %2318 = vmatprep.mubr.f32.mxu0 0.0
        %2319 = vmatmul.mubr.f32.gmra.mrb[0].mxu0 %v2229
        %v2320 = vpop.f32.mrb[0].mxu0
        %v2321 = vadd.f32 %v2223, %v2320
        %v2322 = vpop.f32.mrb[0].mxu0
        %2323 = vmatprep.mubr.f32.mxu0 0.0
        %2324 = vmatmul.mubr.f32.gmra.mrb[0].mxu0 %v2232
        %v2325 = vpop.f32.mrb[0].mxu0
        %v2326 = vadd.f32 %v2223, %v2325
        %v2327 = vpop.f32.mrb[0].mxu0
        %2328 = vmatprep.mubr.f32.mxu0 0.0
        %2329 = vmatmul.mubr.f32.gmra.mrb[0].mxu0 %v2235
        %v2330 = vpop.f32.mrb[0].mxu0
        %v2331 = vadd.f32 %v2223, %v2330
        %v2332 = vpop.f32.mrb[0].mxu0
        %2333 = vmatprep.mubr.f32.mxu0 0.0
        %2334 = vmatmul.mubr.f32.gmra.mrb[0].mxu0 %v2238
        %v2335 = vpop.f32.mrb[0].mxu0
        %v2336 = vadd.f32 %v2223, %v2335
        %v2337 = vpop.f32.mrb[0].mxu0
        %2338 = vmatprep.mubr.f32.mxu0 0.0
        %2339 = vmatmul.mubr.f32.gmra.mrb[0].mxu0 %v2241
        %v2340 = vpop.f32.mrb[0].mxu0
        %v2341 = vadd.f32 %v2223, %v2340
        %v2342 = vpop.f32.mrb[0].mxu0
        %2343 = vmatprep.mubr.f32.mxu0 0.0
        %2344 = vmatmul.mubr.f32.gmra.mrb[0].mxu0 %v2244
        %v2345 = vpop.f32.mrb[0].mxu0
        %v2346 = vadd.f32 %v2223, %v2345
        %v2347 = vpop.f32.mrb[0].mxu0
        %2348 = vmatprep.mubr.f32.mxu0 0.0
        %2349 = vmatmul.mubr.f32.gmra.mrb[0].mxu0 %v2247
        %v2350 = vpop.f32.mrb[0].mxu0
        %v2351 = vadd.f32 %v2223, %v2350
        %v2352 = vpop.f32.mrb[0].mxu0
        %2353 = vdwg.mxu0
        %v2354 = vmax.f32 %v2316, 0.0
        %v2355 = vmax.f32 %v2321, 0.0
        %v2356 = vmax.f32 %v2326, 0.0
        %v2357 = vmax.f32 %v2331, 0.0
        %v2358 = vmax.f32 %v2336, 0.0
        %v2359 = vmax.f32 %v2341, 0.0
        %v2360 = vmax.f32 %v2346, 0.0
        %v2361 = vmax.f32 %v2351, 0.0
        %v2362 = vand.u32 2147483647, %v2316
        %v2363 = vand.u32 2147483647, %v2321
        %v2364 = vand.u32 2147483647, %v2326
        %v2365 = vand.u32 2147483647, %v2331
        %v2366 = vand.u32 2147483647, %v2336
        %v2367 = vand.u32 2147483647, %v2341
        %v2368 = vand.u32 2147483647, %v2346
        %v2369 = vand.u32 2147483647, %v2351
        %v2370 = vsub.f32 0.0, %v2362
        %v2371 = vsub.f32 0.0, %v2363
        %v2372 = vsub.f32 0.0, %v2364
        %v2373 = vsub.f32 0.0, %v2365
        %v2374 = vsub.f32 0.0, %v2366
        %v2375 = vsub.f32 0.0, %v2367
        %v2376 = vsub.f32 0.0, %v2368
        %v2377 = vsub.f32 0.0, %v2369
        %v2378 = vmul.f32 %v2370, 1.442695
        %v2379 = vpow.pop %v2378
        %v2380 = vmul.f32 %v2371, 1.442695
        %v2381 = vpow.pop %v2380
        %v2382 = vmul.f32 %v2372, 1.442695
        %v2383 = vpow.pop %v2382
        %v2384 = vmul.f32 %v2373, 1.442695
        %v2385 = vpow.pop %v2384
        %v2386 = vmul.f32 %v2374, 1.442695
        %v2387 = vpow.pop %v2386
        %v2388 = vmul.f32 %v2375, 1.442695
        %v2389 = vpow.pop %v2388
        %v2390 = vmul.f32 %v2376, 1.442695
        %v2391 = vpow.pop %v2390
        %v2392 = vmul.f32 %v2377, 1.442695
        %v2393 = vpow.pop %v2392
        %v2394 = vadd.f32 %v2379, 1.0
        %v2395 = vlog2.pop %v2394
        %v2396 = vmul.f32 %v2395, 0.6931472
        %v2397 = vmul.f32 -0.5, %v2379
        %v2398 = vadd.f32 %v2397, 1.0
        %v2399 = vmul.f32 %v2398, %v2379
        %v2400 = vand.u32 2147483647, %v2379
        %vm2401 = vcmp.lt.f32.partialorder %v2400, 0.0004427343
        %v2402 = vsel %vm2401, %v2399, %v2396
        %v2403 = vadd.f32 %v2381, 1.0
        %v2404 = vlog2.pop %v2403
        %v2405 = vmul.f32 %v2404, 0.6931472
        %v2406 = vmul.f32 -0.5, %v2381
        %v2407 = vadd.f32 %v2406, 1.0
        %v2408 = vmul.f32 %v2407, %v2381
        %v2409 = vand.u32 2147483647, %v2381
        %vm2410 = vcmp.lt.f32.partialorder %v2409, 0.0004427343
        %v2411 = vsel %vm2410, %v2408, %v2405
        %v2412 = vadd.f32 %v2383, 1.0
        %v2413 = vlog2.pop %v2412
        %v2414 = vmul.f32 %v2413, 0.6931472
        %v2415 = vmul.f32 -0.5, %v2383
        %v2416 = vadd.f32 %v2415, 1.0
        %v2417 = vmul.f32 %v2416, %v2383
        %v2418 = vand.u32 2147483647, %v2383
        %vm2419 = vcmp.lt.f32.partialorder %v2418, 0.0004427343
        %v2420 = vsel %vm2419, %v2417, %v2414
        %v2421 = vadd.f32 %v2385, 1.0
        %v2422 = vlog2.pop %v2421
        %v2423 = vmul.f32 %v2422, 0.6931472
        %v2424 = vmul.f32 -0.5, %v2385
        %v2425 = vadd.f32 %v2424, 1.0
        %v2426 = vmul.f32 %v2425, %v2385
        %v2427 = vand.u32 2147483647, %v2385
        %vm2428 = vcmp.lt.f32.partialorder %v2427, 0.0004427343
        %v2429 = vsel %vm2428, %v2426, %v2423
        %v2430 = vadd.f32 %v2387, 1.0
        %v2431 = vlog2.pop %v2430
        %v2432 = vmul.f32 %v2431, 0.6931472
        %v2433 = vmul.f32 -0.5, %v2387
        %v2434 = vadd.f32 %v2433, 1.0
        %v2435 = vmul.f32 %v2434, %v2387
        %v2436 = vand.u32 2147483647, %v2387
        %vm2437 = vcmp.lt.f32.partialorder %v2436, 0.0004427343
        %v2438 = vsel %vm2437, %v2435, %v2432
        %v2439 = vadd.f32 %v2389, 1.0
        %v2440 = vlog2.pop %v2439
        %v2441 = vmul.f32 %v2440, 0.6931472
        %v2442 = vmul.f32 -0.5, %v2389
        %v2443 = vadd.f32 %v2442, 1.0
        %v2444 = vmul.f32 %v2443, %v2389
        %v2445 = vand.u32 2147483647, %v2389
        %vm2446 = vcmp.lt.f32.partialorder %v2445, 0.0004427343
        %v2447 = vsel %vm2446, %v2444, %v2441
        %v2448 = vadd.f32 %v2391, 1.0
        %v2449 = vlog2.pop %v2448
        %v2450 = vmul.f32 %v2449, 0.6931472
        %v2451 = vmul.f32 -0.5, %v2391
        %v2452 = vadd.f32 %v2451, 1.0
        %v2453 = vmul.f32 %v2452, %v2391
        %v2454 = vand.u32 2147483647, %v2391
        %vm2455 = vcmp.lt.f32.partialorder %v2454, 0.0004427343
        %v2456 = vsel %vm2455, %v2453, %v2450
        %v2457 = vadd.f32 %v2393, 1.0
        %v2458 = vlog2.pop %v2457
        %v2459 = vmul.f32 %v2458, 0.6931472
        %v2460 = vmul.f32 -0.5, %v2393
        %v2461 = vadd.f32 %v2460, 1.0
        %v2462 = vmul.f32 %v2461, %v2393
        %v2463 = vand.u32 2147483647, %v2393
        %vm2464 = vcmp.lt.f32.partialorder %v2463, 0.0004427343
        %v2465 = vsel %vm2464, %v2462, %v2459
        %v2466 = vadd.f32 %v2354, %v2402
        %v2467 = vadd.f32 %v2355, %v2411
        %v2468 = vadd.f32 %v2356, %v2420
        %v2469 = vadd.f32 %v2357, %v2429
        %v2470 = vadd.f32 %v2358, %v2438
        %v2471 = vadd.f32 %v2359, %v2447
        %v2472 = vadd.f32 %v2360, %v2456
        %v2473 = vadd.f32 %v2361, %v2465
        %v2475 = vlaneseq
        %v2476 = vshrl.u32 %v2475, 7
        %v2477 = vsub.s32 0, %v2476
        %v2478 = vrot.slane %v1658, %v2477
        %v2481 = vsel %vm1000, %v2466, 0
        %v2484 = vsel %vm1000, %v2467, 0
        %v2487 = vsel %vm1000, %v2468, 0
        %v2490 = vsel %vm1000, %v2469, 0
        %v2493 = vsel %vm1000, %v2470, 0
        %v2496 = vsel %vm1000, %v2471, 0
        %v2499 = vsel %vm1000, %v2472, 0
        %v2502 = vsel %vm1000, %v2473, 0
        %2504 = vmatprep.subr.mxu0 0.0
        %2505 = vmatpush1.msra.mxu0 %v1654
        %2506 = vmatprep.subr.mxu0 0.0
        %2507 = vmatpush1.msra.mxu0 %v1655
        %2508 = vmatprep.subr.mxu0 0.0
        %2509 = vmatpush1.msra.mxu0 %v1656
        %2510 = vmatprep.subr.mxu0 0.0
        %2511 = vmatpush1.msra.mxu0 %v1657
        %2512 = vmatprep.subr.mxu0 0.0
        %2513 = vmatpush1.msra.mxu0 0.0
        %2514 = vmatprep.subr.mxu0 0.0
        %2515 = vmatpush1.msra.mxu0 0.0
        %2516 = vmatprep.subr.mxu0 0.0
        %2517 = vmatpush1.msra.mxu0 0.0
        %2518 = vmatprep.subr.mxu0 0.0
        %2519 = vmatpush1.msra.mxu0 0.0
        %2520 = vmatprep.subr.mxu0 0.0
        %2521 = vmatpush1.msra.mxu0 0.0
        %2522 = vmatprep.subr.mxu0 0.0
        %2523 = vmatpush1.msra.mxu0 0.0
        %2524 = vmatprep.subr.mxu0 0.0
        %2525 = vmatpush1.msra.mxu0 0.0
        %2526 = vmatprep.subr.mxu0 0.0
        %2527 = vmatpush1.msra.mxu0 0.0
        %2528 = vmatprep.subr.mxu0 0.0
        %2529 = vmatpush1.msra.mxu0 0.0
        %2530 = vmatprep.subr.mxu0 0.0
        %2531 = vmatpush1.msra.mxu0 0.0
        %2532 = vmatprep.subr.mxu0 0.0
        %2533 = vmatpush1.msra.mxu0 0.0
        %2534 = vmatprep.subr.mxu0 0.0
        %2535 = vmatpush1.msra.mxu0 0.0
        %2536 = vmatprep.subr.mxu0 0.0
        %2537 = vmatpush1.msra.mxu0 0.0
        %2538 = vmatprep.subr.mxu0 0.0
        %2539 = vmatpush1.msra.mxu0 0.0
        %2540 = vmatprep.subr.mxu0 0.0
        %2541 = vmatpush1.msra.mxu0 0.0
        %2542 = vmatprep.subr.mxu0 0.0
        %2543 = vmatpush1.msra.mxu0 0.0
        %2544 = vmatprep.subr.mxu0 0.0
        %2545 = vmatpush1.msra.mxu0 0.0
        %2546 = vmatprep.subr.mxu0 0.0
        %2547 = vmatpush1.msra.mxu0 0.0
        %2548 = vmatprep.subr.mxu0 0.0
        %2549 = vmatpush1.msra.mxu0 0.0
        %2550 = vmatprep.subr.mxu0 0.0
        %2551 = vmatpush1.msra.mxu0 0.0
        %2552 = vmatprep.subr.mxu0 0.0
        %2553 = vmatpush1.msra.mxu0 0.0
        %2554 = vmatprep.subr.mxu0 0.0
        %2555 = vmatpush1.msra.mxu0 0.0
        %2556 = vmatprep.subr.mxu0 0.0
        %2557 = vmatpush1.msra.mxu0 0.0
        %2558 = vmatprep.subr.mxu0 0.0
        %2559 = vmatpush1.msra.mxu0 0.0
        %2560 = vmatprep.subr.mxu0 0.0
        %2561 = vmatpush1.msra.mxu0 0.0
        %2562 = vmatprep.subr.mxu0 0.0
        %2563 = vmatpush1.msra.mxu0 0.0
        %2564 = vmatprep.subr.mxu0 0.0
        %2565 = vmatpush1.msra.mxu0 0.0
        %2566 = vmatprep.subr.mxu0 0.0
        %2567 = vmatpush1.msra.mxu0 0.0
        %2568 = vmatprep.mubr.f32.mxu0 0.0
        %2569 = vmatmul.mubr.f32.gmra.mrb[0].mxu0 %v2481
        %v2570 = vpop.f32.mrb[0].mxu0
        %v2571 = vadd.f32 %v2478, %v2570
        %v2572 = vpop.f32.mrb[0].mxu0
        %2573 = vmatprep.mubr.f32.mxu0 0.0
        %2574 = vmatmul.mubr.f32.gmra.mrb[0].mxu0 %v2484
        %v2575 = vpop.f32.mrb[0].mxu0
        %v2576 = vadd.f32 %v2478, %v2575
        %v2577 = vpop.f32.mrb[0].mxu0
        %2578 = vmatprep.mubr.f32.mxu0 0.0
        %2579 = vmatmul.mubr.f32.gmra.mrb[0].mxu0 %v2487
        %v2580 = vpop.f32.mrb[0].mxu0
        %v2581 = vadd.f32 %v2478, %v2580
        %v2582 = vpop.f32.mrb[0].mxu0
        %2583 = vmatprep.mubr.f32.mxu0 0.0
        %2584 = vmatmul.mubr.f32.gmra.mrb[0].mxu0 %v2490
        %v2585 = vpop.f32.mrb[0].mxu0
        %v2586 = vadd.f32 %v2478, %v2585
        %v2587 = vpop.f32.mrb[0].mxu0
        %2588 = vmatprep.mubr.f32.mxu0 0.0
        %2589 = vmatmul.mubr.f32.gmra.mrb[0].mxu0 %v2493
        %v2590 = vpop.f32.mrb[0].mxu0
        %v2591 = vadd.f32 %v2478, %v2590
        %v2592 = vpop.f32.mrb[0].mxu0
        %2593 = vmatprep.mubr.f32.mxu0 0.0
        %2594 = vmatmul.mubr.f32.gmra.mrb[0].mxu0 %v2496
        %v2595 = vpop.f32.mrb[0].mxu0
        %v2596 = vadd.f32 %v2478, %v2595
        %v2597 = vpop.f32.mrb[0].mxu0
        %2598 = vmatprep.mubr.f32.mxu0 0.0
        %2599 = vmatmul.mubr.f32.gmra.mrb[0].mxu0 %v2499
        %v2600 = vpop.f32.mrb[0].mxu0
        %v2601 = vadd.f32 %v2478, %v2600
        %v2602 = vpop.f32.mrb[0].mxu0
        %2603 = vmatprep.mubr.f32.mxu0 0.0
        %2604 = vmatmul.mubr.f32.gmra.mrb[0].mxu0 %v2502
        %v2605 = vpop.f32.mrb[0].mxu0
        %v2606 = vadd.f32 %v2478, %v2605
        %v2607 = vpop.f32.mrb[0].mxu0
        %2608 = vdwg.mxu0
        %v2609 = vmax.f32 %v2571, 0.0
        %v2610 = vmax.f32 %v2576, 0.0
        %v2611 = vmax.f32 %v2581, 0.0
        %v2612 = vmax.f32 %v2586, 0.0
        %v2613 = vmax.f32 %v2591, 0.0
        %v2614 = vmax.f32 %v2596, 0.0
        %v2615 = vmax.f32 %v2601, 0.0
        %v2616 = vmax.f32 %v2606, 0.0
        %v2617 = vand.u32 2147483647, %v2571
        %v2618 = vand.u32 2147483647, %v2576
        %v2619 = vand.u32 2147483647, %v2581
        %v2620 = vand.u32 2147483647, %v2586
        %v2621 = vand.u32 2147483647, %v2591
        %v2622 = vand.u32 2147483647, %v2596
        %v2623 = vand.u32 2147483647, %v2601
        %v2624 = vand.u32 2147483647, %v2606
        %v2625 = vsub.f32 0.0, %v2617
        %v2626 = vsub.f32 0.0, %v2618
        %v2627 = vsub.f32 0.0, %v2619
        %v2628 = vsub.f32 0.0, %v2620
        %v2629 = vsub.f32 0.0, %v2621
        %v2630 = vsub.f32 0.0, %v2622
        %v2631 = vsub.f32 0.0, %v2623
        %v2632 = vsub.f32 0.0, %v2624
        %v2633 = vmul.f32 %v2625, 1.442695
        %v2634 = vpow.pop %v2633
        %v2635 = vmul.f32 %v2626, 1.442695
        %v2636 = vpow.pop %v2635
        %v2637 = vmul.f32 %v2627, 1.442695
        %v2638 = vpow.pop %v2637
        %v2639 = vmul.f32 %v2628, 1.442695
        %v2640 = vpow.pop %v2639
        %v2641 = vmul.f32 %v2629, 1.442695
        %v2642 = vpow.pop %v2641
        %v2643 = vmul.f32 %v2630, 1.442695
        %v2644 = vpow.pop %v2643
        %v2645 = vmul.f32 %v2631, 1.442695
        %v2646 = vpow.pop %v2645
        %v2647 = vmul.f32 %v2632, 1.442695
        %v2648 = vpow.pop %v2647
        %v2649 = vadd.f32 %v2634, 1.0
        %v2650 = vlog2.pop %v2649
        %v2651 = vmul.f32 %v2650, 0.6931472
        %v2652 = vmul.f32 -0.5, %v2634
        %v2653 = vadd.f32 %v2652, 1.0
        %v2654 = vmul.f32 %v2653, %v2634
        %v2655 = vand.u32 2147483647, %v2634
        %vm2656 = vcmp.lt.f32.partialorder %v2655, 0.0004427343
        %v2657 = vsel %vm2656, %v2654, %v2651
        %v2658 = vadd.f32 %v2636, 1.0
        %v2659 = vlog2.pop %v2658
        %v2660 = vmul.f32 %v2659, 0.6931472
        %v2661 = vmul.f32 -0.5, %v2636
        %v2662 = vadd.f32 %v2661, 1.0
        %v2663 = vmul.f32 %v2662, %v2636
        %v2664 = vand.u32 2147483647, %v2636
        %vm2665 = vcmp.lt.f32.partialorder %v2664, 0.0004427343
        %v2666 = vsel %vm2665, %v2663, %v2660
        %v2667 = vadd.f32 %v2638, 1.0
        %v2668 = vlog2.pop %v2667
        %v2669 = vmul.f32 %v2668, 0.6931472
        %v2670 = vmul.f32 -0.5, %v2638
        %v2671 = vadd.f32 %v2670, 1.0
        %v2672 = vmul.f32 %v2671, %v2638
        %v2673 = vand.u32 2147483647, %v2638
        %vm2674 = vcmp.lt.f32.partialorder %v2673, 0.0004427343
        %v2675 = vsel %vm2674, %v2672, %v2669
        %v2676 = vadd.f32 %v2640, 1.0
        %v2677 = vlog2.pop %v2676
        %v2678 = vmul.f32 %v2677, 0.6931472
        %v2679 = vmul.f32 -0.5, %v2640
        %v2680 = vadd.f32 %v2679, 1.0
        %v2681 = vmul.f32 %v2680, %v2640
        %v2682 = vand.u32 2147483647, %v2640
        %vm2683 = vcmp.lt.f32.partialorder %v2682, 0.0004427343
        %v2684 = vsel %vm2683, %v2681, %v2678
        %v2685 = vadd.f32 %v2642, 1.0
        %v2686 = vlog2.pop %v2685
        %v2687 = vmul.f32 %v2686, 0.6931472
        %v2688 = vmul.f32 -0.5, %v2642
        %v2689 = vadd.f32 %v2688, 1.0
        %v2690 = vmul.f32 %v2689, %v2642
        %v2691 = vand.u32 2147483647, %v2642
        %vm2692 = vcmp.lt.f32.partialorder %v2691, 0.0004427343
        %v2693 = vsel %vm2692, %v2690, %v2687
        %v2694 = vadd.f32 %v2644, 1.0
        %v2695 = vlog2.pop %v2694
        %v2696 = vmul.f32 %v2695, 0.6931472
        %v2697 = vmul.f32 -0.5, %v2644
        %v2698 = vadd.f32 %v2697, 1.0
        %v2699 = vmul.f32 %v2698, %v2644
        %v2700 = vand.u32 2147483647, %v2644
        %vm2701 = vcmp.lt.f32.partialorder %v2700, 0.0004427343
        %v2702 = vsel %vm2701, %v2699, %v2696
        %v2703 = vadd.f32 %v2646, 1.0
        %v2704 = vlog2.pop %v2703
        %v2705 = vmul.f32 %v2704, 0.6931472
        %v2706 = vmul.f32 -0.5, %v2646
        %v2707 = vadd.f32 %v2706, 1.0
        %v2708 = vmul.f32 %v2707, %v2646
        %v2709 = vand.u32 2147483647, %v2646
        %vm2710 = vcmp.lt.f32.partialorder %v2709, 0.0004427343
        %v2711 = vsel %vm2710, %v2708, %v2705
        %v2712 = vadd.f32 %v2648, 1.0
        %v2713 = vlog2.pop %v2712
        %v2714 = vmul.f32 %v2713, 0.6931472
        %v2715 = vmul.f32 -0.5, %v2648
        %v2716 = vadd.f32 %v2715, 1.0
        %v2717 = vmul.f32 %v2716, %v2648
        %v2718 = vand.u32 2147483647, %v2648
        %vm2719 = vcmp.lt.f32.partialorder %v2718, 0.0004427343
        %v2720 = vsel %vm2719, %v2717, %v2714
        %v2721 = vadd.f32 %v2609, %v2657
        %v2722 = vadd.f32 %v2610, %v2666
        %v2723 = vadd.f32 %v2611, %v2675
        %v2724 = vadd.f32 %v2612, %v2684
        %v2725 = vadd.f32 %v2613, %v2693
        %v2726 = vadd.f32 %v2614, %v2702
        %v2727 = vadd.f32 %v2615, %v2711
        %v2728 = vadd.f32 %v2616, %v2720
        %v2729 = vsub.f32 %v2721, 0.6931472
        %v2730 = vsub.f32 %v2722, 0.6931472
        %v2731 = vsub.f32 %v2723, 0.6931472
        %v2732 = vsub.f32 %v2724, 0.6931472
        %v2733 = vsub.f32 %v2725, 0.6931472
        %v2734 = vsub.f32 %v2726, 0.6931472
        %v2735 = vsub.f32 %v2727, 0.6931472
        %v2736 = vsub.f32 %v2728, 0.6931472
        %v2737 = vadd.f32 %v1641, %v2729
        %v2738 = vadd.f32 %v1642, %v2730
        %v2739 = vadd.f32 %v1643, %v2731
        %v2740 = vadd.f32 %v1644, %v2732
        %v2741 = vadd.f32 %v1645, %v2733
        %v2742 = vadd.f32 %v1646, %v2734
        %v2743 = vadd.f32 %v1647, %v2735
        %v2744 = vadd.f32 %v1648, %v2736
        %2745 = vst.msk [vmem:[%s369] sm:$0xff] %vm1000, %v2737
        %2746 = vst.msk [vmem:[%s369 + $0x8] sm:$0xff] %vm1000, %v2738
        %2747 = vst.msk [vmem:[%s369 + $0x10] sm:$0xff] %vm1000, %v2739
        %2748 = vst.msk [vmem:[%s369 + $0x18] sm:$0xff] %vm1000, %v2740
        %2749 = vst.msk [vmem:[%s369 + $0x20] sm:$0xff] %vm1000, %v2741
        %2750 = vst.msk [vmem:[%s369 + $0x28] sm:$0xff] %vm1000, %v2742
        %2751 = vst.msk [vmem:[%s369 + $0x30] sm:$0xff] %vm1000, %v2743
        %2752 = vst.msk [vmem:[%s369 + $0x38] sm:$0xff] %vm1000, %v2744
        %s2753 = sand.u32 %s252, 1
        %s2754 = scalar_lea.sflag [#allocation3], %s2753
        %s2755 = sand.u32 %s252, 1
        %s2756 = smul.addr %s2755, 64
        %s2757 = scalar_lea.vmem [#allocation2], %s2756
        // Predicated region
        $region61: #{update_x_pallas.1} parent=59 // pred_check
          %p2758 = pneg %p262
        $region62: #{update_x_pallas.1} parent=59 // pred_check_branch
          %2760 = sbr.rel (%p2758) target = $region64
        $region63: #{update_x_pallas.1} parent=59 // pred_region
          %s2761 = smul.u32 8, %s24
          %s2763 = ssub.s32 1024, 1024
          %2764 = vsyncadd %s2754, %s2763
          %s2765 = smul.addr %s2761, 128
          %s2766 = scalar_lea.hbm %s10, %s2765
          %s2767 = sshll.u32 %s2757, 4
          %s2768 = int_to_ptr.vmem [resolvable:$true] %s2767
          %2773 = dma.vmem_to_hbm [thread:$0]  %s2768, 1024, %s2766, %s2754, 128, 128, 8
        $region64: #{update_x_pallas.1} parent=59 // pred_fallthru
          _
      $region60: #{update_x_pallas.1} parent=5 // pred_fallthru
        _
      %p2774 = scmp.le.s32.totalorder 2, %s19
      // Predicated region
      $region65: #{update_x_pallas.1} parent=5 // pred_check
        %p2775 = pneg %p2774
      $region66: #{update_x_pallas.1} parent=5 // pred_check_branch
        %2777 = sbr.rel (%p2775) target = $region68
      $region67: #{update_x_pallas.1} parent=5 // pred_region
        %s2778 = ssub.s32 %s19, 2
        // Predicated region
        $region69: #{update_x_pallas.1} parent=67 // pred_check
          %p2779 = pneg %p268
        $region70: #{update_x_pallas.1} parent=67 // pred_check_branch
          %2781 = sbr.rel (%p2779) target = $region72
        $region71: #{update_x_pallas.1} parent=67 // pred_region
          %s2782 = sand.u32 %s253, 1
          %s2783 = scalar_lea.sflag [#allocation3], %s2782
          %s2784 = sand.u32 %s253, 1
          %s2785 = smul.addr %s2784, 64
          %s2786 = scalar_lea.vmem [#allocation2], %s2785
          %2787 = dma.done %s2783, 1024
        $region72: #{update_x_pallas.1} parent=67 // pred_fallthru
          _
      $region68: #{update_x_pallas.1} parent=5 // pred_fallthru
        _
    $region6: #{update_x_pallas.1} parent=1 // loop_footer
      %s23 = sadd.s32 1, %s19
    $region7: #{update_x_pallas.1} parent=1 // loop_footer_branch
      %18 = sbr.rel target = $region3
    $region8: #{update_x_pallas.1} parent=1 // loop_exit
      _
    %2788 = vsyncpa [#allocation3], 1
    %s2789 = scalar_lea.sflag [#allocation3], 1
    %2790 = vsyncpa %s2789, 1

</llo_original>
